<compile_context>
chip_gen: v5e
topology: v5e:2x2
jax: 0.10.0
libtpu: 0.0.40
codegen_flags: <defaults>
</compile_context>

<pallas_src>
import functools

import jax
import jax.numpy as jnp
from jax.experimental import pallas as pl
from jax.experimental.pallas import tpu as pltpu

IN_DIM = 784
HID_DIM = 200
OUT_DIM = 10

HID_PAD = 256   # hidden padded to a lane multiple; padded columns/rows are zero
OUT_PAD = 128   # output padded to one full lane width -> unmasked vst


def mlp_kernel(x_ref, w1_ref, b1_ref, w2_ref, b2_ref, o_ref):
    # x_ref:(tm,784) f32   w1_ref:(784,256) bf16   b1_ref:(1,256) f32
    # w2_ref:(256,128) bf16 b2_ref:(1,128) f32     o_ref:(tm,128) f32
    x_bf = x_ref[...].astype(w1_ref.dtype)          # in-kernel f32 -> bf16 cast
    h = jnp.dot(x_bf, w1_ref[...], preferred_element_type=jnp.float32)
    h = jnp.maximum(h + b1_ref[...], 0.0)           # bias + ReLU in f32
    out = jnp.dot(h.astype(w2_ref.dtype), w2_ref[...],
                  preferred_element_type=jnp.float32)
    o_ref[...] = (out + b2_ref[...]).astype(o_ref.dtype)


def prepare_params(w1, b1, w2, b2, compute_dtype=jnp.bfloat16):
    """Pad/cast the weights ONCE (hoisted out of the per-call forward path)."""
    w1p = jnp.zeros((IN_DIM, HID_PAD), compute_dtype).at[:, :HID_DIM].set(
        w1.astype(compute_dtype))
    b1p = jnp.zeros((1, HID_PAD), jnp.float32).at[:, :HID_DIM].set(
        b1.reshape(1, HID_DIM).astype(jnp.float32))
    w2p = jnp.zeros((HID_PAD, OUT_PAD), compute_dtype).at[:HID_DIM, :OUT_DIM].set(
        w2.astype(compute_dtype))
    b2p = jnp.zeros((1, OUT_PAD), jnp.float32).at[:, :OUT_DIM].set(
        b2.reshape(1, OUT_DIM).astype(jnp.float32))
    return w1p, b1p, w2p, b2p


@functools.partial(jax.jit, static_argnames=("tm",))
def net_forward(x, w1p, b1p, w2p, b2p, *, tm=512):
    """Fused Net.forward: relu(x @ W1 + b1) @ W2 + b2 -> (n, 10) f32."""
    n = x.shape[0]
    assert x.shape[1] == IN_DIM

    # Row tile: multiple of 8; capped at ~n/2 so the grid has >= 2 blocks whenever
    # the batch allows it (two TensorCores on v7x), and never larger than needed.
    half = max(8, pl.cdiv(pl.cdiv(n, 2), 8) * 8)
    tm = max(8, min(tm, half))
    grid = (pl.cdiv(n, tm),)

    out_padded = pl.pallas_call(
        mlp_kernel,
        out_shape=jax.ShapeDtypeStruct((n, OUT_PAD), jnp.float32),
        grid_spec=pltpu.PrefetchScalarGridSpec(
            num_scalar_prefetch=0,
            grid=grid,
            in_specs=[
                pl.BlockSpec((tm, IN_DIM), lambda i: (i, 0)),        # streamed f32 rows of x
                pl.BlockSpec((IN_DIM, HID_PAD), lambda i: (0, 0)),   # resident W1 (bf16)
                pl.BlockSpec((1, HID_PAD), lambda i: (0, 0)),        # resident b1 (f32)
                pl.BlockSpec((HID_PAD, OUT_PAD), lambda i: (0, 0)),  # resident W2 (bf16)
                pl.BlockSpec((1, OUT_PAD), lambda i: (0, 0)),        # resident b2 (f32)
            ],
            out_specs=pl.BlockSpec((tm, OUT_PAD), lambda i: (i, 0)),
        ),
        compiler_params=pltpu.CompilerParams(
            dimension_semantics=("parallel",)),
    )(x, w1p, b1p, w2p, b2p)

    return out_padded[:, :OUT_DIM]


def init_params(key):
    # Deterministic init mimicking nn.Linear default: U(-1/sqrt(fan_in), 1/sqrt(fan_in)).
    k1, k2, k3, k4 = jax.random.split(key, 4)
    bound1 = 1.0 / jnp.sqrt(IN_DIM)
    bound2 = 1.0 / jnp.sqrt(HID_DIM)
    w1 = jax.random.uniform(k1, (IN_DIM, HID_DIM), jnp.float32, -bound1, bound1)
    b1 = jax.random.uniform(k2, (HID_DIM,), jnp.float32, -bound1, bound1)
    w2 = jax.random.uniform(k3, (HID_DIM, OUT_DIM), jnp.float32, -bound2, bound2)
    b2 = jax.random.uniform(k4, (OUT_DIM,), jnp.float32, -bound2, bound2)
    return w1, b1, w2, b2


if __name__ == "__main__":
    key = jax.random.PRNGKey(0)
    kx, kp = jax.random.split(key)

    batch = 256  # small example batch (original PyTorch script uses 1000 x 784)
    x = jax.random.normal(kx, (batch, IN_DIM), dtype=jnp.float32)
    w1, b1, w2, b2 = init_params(kp)

    # Pad/cast weights once, reuse for every forward call.
    params = prepare_params(w1, b1, w2, b2)

    out = jax.block_until_ready(net_forward(x, *params))

    # Pure-JAX fp32 reference of Net.forward (kernel streams bf16 inputs with f32
    # accumulation, so allow a modest tolerance).
    ref = jnp.maximum(x @ w1 + b1, 0.0) @ w2 + b2
    assert out.shape == (batch, OUT_DIM)
    err = float(jnp.max(jnp.abs(out - ref)))
    assert jnp.allclose(out, ref, atol=2e-2, rtol=2e-2), f"max abs err {err}"

    print("KERNEL_OK")
</pallas_src>

<mosaic_0001>
module attributes {stable_mosaic.version = 11 : i64} {
  func.func @mlp_kernel(%arg0: i32, %arg1: memref<128x784xf32, #tpu.memory_space<vmem>>, %arg2: memref<784x256xbf16, #tpu.memory_space<vmem>>, %arg3: memref<1x256xf32, #tpu.memory_space<vmem>>, %arg4: memref<256x128xbf16, #tpu.memory_space<vmem>>, %arg5: memref<1x128xf32, #tpu.memory_space<vmem>>, %arg6: memref<128x128xf32, #tpu.memory_space<vmem>>) attributes {dimension_semantics = [#tpu.dimension_semantics<parallel>], iteration_bounds = array<i64: 2>, scalar_prefetch = 0 : i64, scratch_operands = 0 : i64, tpu.core_type = #tpu.core_type<tc>, window_params = [{transform_indices = @transform_0, window_bounds = array<i64: 128, 784>}, {pipeline_mode = #tpu.pipeline_mode<synchronous>, transform_indices = @transform_1, window_bounds = array<i64: 784, 256>}, {pipeline_mode = #tpu.pipeline_mode<synchronous>, transform_indices = @transform_2, window_bounds = array<i64: 1, 256>}, {pipeline_mode = #tpu.pipeline_mode<synchronous>, transform_indices = @transform_3, window_bounds = array<i64: 256, 128>}, {pipeline_mode = #tpu.pipeline_mode<synchronous>, transform_indices = @transform_4, window_bounds = array<i64: 1, 128>}, {transform_indices = @transform_5, window_bounds = array<i64: 128, 128>}]} {
    %c0 = arith.constant 0 : index
    %c0_0 = arith.constant 0 : index
    %0 = vector.load %arg1[%c0, %c0_0] : memref<128x784xf32, #tpu.memory_space<vmem>>, vector<128x784xf32>
    %1 = arith.truncf %0 : vector<128x784xf32> to vector<128x784xbf16>
    %c0_1 = arith.constant 0 : index
    %c0_2 = arith.constant 0 : index
    %2 = vector.load %arg2[%c0_1, %c0_2] : memref<784x256xbf16, #tpu.memory_space<vmem>>, vector<784x256xbf16>
    %cst = arith.constant dense<0.000000e+00> : vector<128x256xf32>
    %3 = tpu.matmul %1, %2, %cst {dimension_numbers = #tpu.dot_dimension_numbers<[1], [0], [0], [1], [0, 0, 1, 1], [], []>} : vector<128x784xbf16>, vector<784x256xbf16>, vector<128x256xf32> -> vector<128x256xf32>
    %c0_3 = arith.constant 0 : index
    %c0_4 = arith.constant 0 : index
    %4 = vector.load %arg3[%c0_3, %c0_4] : memref<1x256xf32, #tpu.memory_space<vmem>>, vector<1x256xf32>
    %5 = vector.broadcast %4 : vector<1x256xf32> to vector<128x256xf32>
    %6 = arith.addf %3, %5 : vector<128x256xf32>
    %cst_5 = arith.constant 0.000000e+00 : f32
    %7 = vector.broadcast %cst_5 : f32 to vector<128x256xf32>
    %8 = arith.maximumf %6, %7 : vector<128x256xf32>
    %9 = arith.truncf %8 : vector<128x256xf32> to vector<128x256xbf16>
    %c0_6 = arith.constant 0 : index
    %c0_7 = arith.constant 0 : index
    %10 = vector.load %arg4[%c0_6, %c0_7] : memref<256x128xbf16, #tpu.memory_space<vmem>>, vector<256x128xbf16>
    %cst_8 = arith.constant dense<0.000000e+00> : vector<128x128xf32>
    %11 = tpu.matmul %9, %10, %cst_8 {dimension_numbers = #tpu.dot_dimension_numbers<[1], [0], [0], [1], [0, 0, 1, 1], [], []>} : vector<128x256xbf16>, vector<256x128xbf16>, vector<128x128xf32> -> vector<128x128xf32>
    %c0_9 = arith.constant 0 : index
    %c0_10 = arith.constant 0 : index
    %12 = vector.load %arg5[%c0_9, %c0_10] : memref<1x128xf32, #tpu.memory_space<vmem>>, vector<1x128xf32>
    %13 = vector.broadcast %12 : vector<1x128xf32> to vector<128x128xf32>
    %14 = arith.addf %11, %13 : vector<128x128xf32>
    %c0_11 = arith.constant 0 : index
    %c0_12 = arith.constant 0 : index
    %15 = vector.load %arg6[%c0_11, %c0_12] : memref<128x128xf32, #tpu.memory_space<vmem>>, vector<128x128xf32>
    tpu.vector_store %arg6[%c0_11, %c0_12], %14 {strides = array<i32>} : memref<128x128xf32, #tpu.memory_space<vmem>>, vector<128x128xf32>,
    return
  }
  func.func @transform_0(%arg0: i32) -> (i32, i32) {
    %c0_i32 = arith.constant 0 : i32
    %c0_i32_0 = arith.constant 0 : i32
    return %arg0, %c0_i32 : i32, i32
  }
  func.func @transform_1(%arg0: i32) -> (i32, i32) {
    %c0_i32 = arith.constant 0 : i32
    %c0_i32_0 = arith.constant 0 : i32
    %c0_i32_1 = arith.constant 0 : i32
    return %c0_i32, %c0_i32_0 : i32, i32
  }
  func.func @transform_2(%arg0: i32) -> (i32, i32) {
    %c0_i32 = arith.constant 0 : i32
    %c0_i32_0 = arith.constant 0 : i32
    %c0_i32_1 = arith.constant 0 : i32
    return %c0_i32, %c0_i32_0 : i32, i32
  }
  func.func @transform_3(%arg0: i32) -> (i32, i32) {
    %c0_i32 = arith.constant 0 : i32
    %c0_i32_0 = arith.constant 0 : i32
    %c0_i32_1 = arith.constant 0 : i32
    return %c0_i32, %c0_i32_0 : i32, i32
  }
  func.func @transform_4(%arg0: i32) -> (i32, i32) {
    %c0_i32 = arith.constant 0 : i32
    %c0_i32_0 = arith.constant 0 : i32
    %c0_i32_1 = arith.constant 0 : i32
    return %c0_i32, %c0_i32_0 : i32, i32
  }
  func.func @transform_5(%arg0: i32) -> (i32, i32) {
    %c0_i32 = arith.constant 0 : i32
    %c0_i32_0 = arith.constant 0 : i32
    return %arg0, %c0_i32 : i32, i32
  }
}

</mosaic_0001>

<llo_original>
// kernel: net_forward.1
$region0: #{net_forward.1}
  #allocation0 [shape = 'u32[]', space=smem, size = 0x4, offset = 0x4, fixed_abs, tag = 'smem constant byte address 0x4 - core index']
  #allocation1 [shape = 'u32[72,128]{1,0:T(1,128)}', space=vmem, size = 0x9000, scoped, tag = 'internal scratch']
  %s0 = inlined_call_operand.vmem [shape: f32[256,784], index: 0, kind: input, shape index: {}]
  %s1 = inlined_call_operand.vmem [shape: bf16[784,256], index: 1, kind: input, shape index: {}]
  %s2 = inlined_call_operand.vmem [shape: f32[1,256], index: 2, kind: input, shape index: {}]
  %s3 = inlined_call_operand.vmem [shape: bf16[256,128], index: 3, kind: input, shape index: {}]
  %s4 = inlined_call_operand.vmem [shape: f32[1,128], index: 4, kind: input, shape index: {}]
  %s5 = inlined_call_operand.vmem [shape: f32[256,128], index: 5, kind: output, shape index: {}]
  %s6 = sld [smem:[#allocation0]]
  $region53: #{net_forward.1} parent=0
    _
  %s8 = ssub.s32 1, %s6
  %s9 = scalar_select 0, %s8, %s6
  loop: start=0, step=1, limit=4
  $region2: #{net_forward.1} parent=0 // loop_pre_header
    _
  $region3: #{net_forward.1} parent=0 // loop_header
    %s11 = sphi 0, %s15
    %p12 = scmp.ge.s32.totalorder %s11, 4
    %s21 = sphi 0, %s23
    %s24 = sphi 0, %s21
    %s25 = sphi 0, %s24
    %s41 = sphi 0, %s25
    %s45 = sphi 0, %s45
    %s47 = sphi 0, %s45
    %s48 = sphi 0, %s47
    %s62 = sphi 0, %s48
    %s66 = sphi 0, %s66
    %s68 = sphi 0, %s66
    %s69 = sphi 0, %s68
    %s83 = sphi 0, %s69
    %s87 = sphi 0, %s87
    %s89 = sphi 0, %s87
    %s90 = sphi 0, %s89
    %s104 = sphi 0, %s90
    %s108 = sphi 0, %s108
    %s110 = sphi 0, %s108
    %s111 = sphi 0, %s110
    %s125 = sphi 0, %s111
    %s131 = sphi 0, %s133
    %s134 = sphi 0, %s131
    %s135 = sphi 0, %s134
    %s151 = sphi 0, %s135
  $region4: #{net_forward.1} parent=0 // loop_header_branch
    %14 = sbr.rel (%p12) target = $region8
  $region5: #{net_forward.1} parent=0 // loop_body
    %s16 = ssub.s32 %s11, 1
    %s17 = ssub.s32 %s11, 2
    %s18 = sadd.s32 %s11, 1
    %s19 = ssub.s32 %s11, %s18
    %p20 = scmp.eq.s32.totalorder %s19, 0
    %s22 = sadd.s32 %s21, 1
    %s23 = scalar_select %p20, %s21, %s22
    %p26 = pneg %p20
    %p27 = scmp.eq.s32.totalorder %s11, 1
    %p28 = por %p26, %p27
    %p29 = scmp.ne.s32.totalorder %s21, %s24
    %p30 = scmp.eq.s32.totalorder %s11, 0
    %p31 = por %p29, %p30
    %p32 = scmp.ne.s32.totalorder %s21, %s24
    %p33 = scmp.eq.s32.totalorder %s16, 1
    %p34 = por %p32, %p33
    %p35 = scmp.ne.s32.totalorder %s24, %s25
    %p36 = scmp.eq.s32.totalorder %s16, 0
    %p37 = por %p35, %p36
    %p38 = scmp.ne.s32.totalorder %s24, %s25
    %p39 = scmp.eq.s32.totalorder %s17, 1
    %p40 = por %p38, %p39
    %p42 = scmp.ne.s32.totalorder %s25, %s41
    %p43 = scmp.eq.s32.totalorder %s17, 0
    %p44 = por %p42, %p43
    %s46 = sadd.s32 %s45, 1
    %p49 = scmp.eq.s32.totalorder %s11, 1
    %p50 = scmp.ne.s32.totalorder %s45, %s47
    %p51 = scmp.eq.s32.totalorder %s11, 0
    %p52 = por %p50, %p51
    %p53 = scmp.ne.s32.totalorder %s45, %s47
    %p54 = scmp.eq.s32.totalorder %s16, 1
    %p55 = por %p53, %p54
    %p56 = scmp.ne.s32.totalorder %s47, %s48
    %p57 = scmp.eq.s32.totalorder %s16, 0
    %p58 = por %p56, %p57
    %p59 = scmp.ne.s32.totalorder %s47, %s48
    %p60 = scmp.eq.s32.totalorder %s17, 1
    %p61 = por %p59, %p60
    %p63 = scmp.ne.s32.totalorder %s48, %s62
    %p64 = scmp.eq.s32.totalorder %s17, 0
    %p65 = por %p63, %p64
    %s67 = sadd.s32 %s66, 1
    %p70 = scmp.eq.s32.totalorder %s11, 1
    %p71 = scmp.ne.s32.totalorder %s66, %s68
    %p72 = scmp.eq.s32.totalorder %s11, 0
    %p73 = por %p71, %p72
    %p74 = scmp.ne.s32.totalorder %s66, %s68
    %p75 = scmp.eq.s32.totalorder %s16, 1
    %p76 = por %p74, %p75
    %p77 = scmp.ne.s32.totalorder %s68, %s69
    %p78 = scmp.eq.s32.totalorder %s16, 0
    %p79 = por %p77, %p78
    %p80 = scmp.ne.s32.totalorder %s68, %s69
    %p81 = scmp.eq.s32.totalorder %s17, 1
    %p82 = por %p80, %p81
    %p84 = scmp.ne.s32.totalorder %s69, %s83
    %p85 = scmp.eq.s32.totalorder %s17, 0
    %p86 = por %p84, %p85
    %s88 = sadd.s32 %s87, 1
    %p91 = scmp.eq.s32.totalorder %s11, 1
    %p92 = scmp.ne.s32.totalorder %s87, %s89
    %p93 = scmp.eq.s32.totalorder %s11, 0
    %p94 = por %p92, %p93
    %p95 = scmp.ne.s32.totalorder %s87, %s89
    %p96 = scmp.eq.s32.totalorder %s16, 1
    %p97 = por %p95, %p96
    %p98 = scmp.ne.s32.totalorder %s89, %s90
    %p99 = scmp.eq.s32.totalorder %s16, 0
    %p100 = por %p98, %p99
    %p101 = scmp.ne.s32.totalorder %s89, %s90
    %p102 = scmp.eq.s32.totalorder %s17, 1
    %p103 = por %p101, %p102
    %p105 = scmp.ne.s32.totalorder %s90, %s104
    %p106 = scmp.eq.s32.totalorder %s17, 0
    %p107 = por %p105, %p106
    %s109 = sadd.s32 %s108, 1
    %p112 = scmp.eq.s32.totalorder %s11, 1
    %p113 = scmp.ne.s32.totalorder %s108, %s110
    %p114 = scmp.eq.s32.totalorder %s11, 0
    %p115 = por %p113, %p114
    %p116 = scmp.ne.s32.totalorder %s108, %s110
    %p117 = scmp.eq.s32.totalorder %s16, 1
    %p118 = por %p116, %p117
    %p119 = scmp.ne.s32.totalorder %s110, %s111
    %p120 = scmp.eq.s32.totalorder %s16, 0
    %p121 = por %p119, %p120
    %p122 = scmp.ne.s32.totalorder %s110, %s111
    %p123 = scmp.eq.s32.totalorder %s17, 1
    %p124 = por %p122, %p123
    %p126 = scmp.ne.s32.totalorder %s111, %s125
    %p127 = scmp.eq.s32.totalorder %s17, 0
    %p128 = por %p126, %p127
    %s129 = ssub.s32 %s11, %s18
    %p130 = scmp.eq.s32.totalorder %s129, 0
    %s132 = sadd.s32 %s131, 1
    %s133 = scalar_select %p130, %s131, %s132
    %p136 = pneg %p130
    %p137 = scmp.eq.s32.totalorder %s11, 1
    %p138 = por %p136, %p137
    %p139 = scmp.ne.s32.totalorder %s131, %s134
    %p140 = scmp.eq.s32.totalorder %s11, 0
    %p141 = por %p139, %p140
    %p142 = scmp.ne.s32.totalorder %s131, %s134
    %p143 = scmp.eq.s32.totalorder %s16, 1
    %p144 = por %p142, %p143
    %p145 = scmp.ne.s32.totalorder %s134, %s135
    %p146 = scmp.eq.s32.totalorder %s16, 0
    %p147 = por %p145, %p146
    %p148 = scmp.ne.s32.totalorder %s134, %s135
    %p149 = scmp.eq.s32.totalorder %s17, 1
    %p150 = por %p148, %p149
    %p152 = scmp.ne.s32.totalorder %s135, %s151
    %p153 = scmp.eq.s32.totalorder %s17, 0
    %p154 = por %p152, %p153
    %p155 = scmp.le.s32.totalorder 1, %s11
    %p156 = scmp.lt.s32.totalorder %s11, 3
    %p157 = pnand %p155, %p156
    %p158 = pneg %p157
    // Predicated region
    $region9: #{net_forward.1} parent=5 // pred_check
      _
    $region10: #{net_forward.1} parent=5 // pred_check_branch
      %160 = sbr.rel (%p157) target = $region12
    $region11: #{net_forward.1} parent=5 // pred_region
      %s161 = ssub.s32 %s11, 1
      // Predicated region
      $region13: #{net_forward.1} parent=11 // pred_check
        %p162 = pneg %p58
      $region14: #{net_forward.1} parent=11 // pred_check_branch
        %164 = sbr.rel (%p162) target = $region16
      $region15: #{net_forward.1} parent=11 // pred_region
        _
      $region16: #{net_forward.1} parent=11 // pred_fallthru
        _
      // Predicated region
      $region17: #{net_forward.1} parent=11 // pred_check
        %p165 = pneg %p79
      $region18: #{net_forward.1} parent=11 // pred_check_branch
        %167 = sbr.rel (%p165) target = $region20
      $region19: #{net_forward.1} parent=11 // pred_region
        _
      $region20: #{net_forward.1} parent=11 // pred_fallthru
        _
      // Predicated region
      $region21: #{net_forward.1} parent=11 // pred_check
        %p168 = pneg %p100
      $region22: #{net_forward.1} parent=11 // pred_check_branch
        %170 = sbr.rel (%p168) target = $region24
      $region23: #{net_forward.1} parent=11 // pred_region
        _
      $region24: #{net_forward.1} parent=11 // pred_fallthru
        _
      // Predicated region
      $region25: #{net_forward.1} parent=11 // pred_check
        %p171 = pneg %p121
      $region26: #{net_forward.1} parent=11 // pred_check_branch
        %173 = sbr.rel (%p171) target = $region28
      $region27: #{net_forward.1} parent=11 // pred_region
        _
      $region28: #{net_forward.1} parent=11 // pred_fallthru
        _
    $region12: #{net_forward.1} parent=5 // pred_fallthru
      _
    %p174 = scmp.lt.s32.totalorder %s11, 2
    // Predicated region
    $region29: #{net_forward.1} parent=5 // pred_check
      %p175 = pneg %p174
    $region30: #{net_forward.1} parent=5 // pred_check_branch
      %177 = sbr.rel (%p175) target = $region32
    $region31: #{net_forward.1} parent=5 // pred_region
      // Predicated region
      $region33: #{net_forward.1} parent=31 // pred_check
        %p178 = pneg %p31
      $region34: #{net_forward.1} parent=31 // pred_check_branch
        %180 = sbr.rel (%p178) target = $region36
      $region35: #{net_forward.1} parent=31 // pred_region
        %s181 = smul.u32 16, %s11
        %p182 = scmp.lt.s32.totalorder %s181, 31
        %s183 = scalar_select %p182, %s181, 31
        %s184 = smul.addr %s183, 7
        %s185 = smul.addr %s184, 8
        %s186 = scalar_lea.vmem %s0, %s185
        %s187 = smul.u32 16, %s11
      $region36: #{net_forward.1} parent=31 // pred_fallthru
        _
    $region32: #{net_forward.1} parent=5 // pred_fallthru
      _
    %p188 = scmp.le.s32.totalorder 1, %s11
    %p189 = scmp.lt.s32.totalorder %s11, 3
    %p190 = pnand %p188, %p189
    %p191 = pneg %p190
    // Predicated region
    $region37: #{net_forward.1} parent=5 // pred_check
      _
    $region38: #{net_forward.1} parent=5 // pred_check_branch
      %193 = sbr.rel (%p190) target = $region40
    $region39: #{net_forward.1} parent=5 // pred_region
      %s194 = ssub.s32 %s11, 1
      %s195 = smul.u32 16, %s16
      %p196 = scmp.lt.s32.totalorder %s195, 31
      %s197 = scalar_select %p196, %s195, 31
      %s198 = smul.addr %s197, 7
      %s199 = smul.addr %s198, 8
      %s200 = scalar_lea.vmem %s0, %s199
      %p201 = pneg %p37
      %p202 = pneg %p34
      %p203 = pneg %p58
      %p204 = pneg %p55
      %p205 = pneg %p79
      %p206 = pneg %p76
      %p207 = pneg %p100
      %p208 = pneg %p97
      %p209 = pneg %p121
      %p210 = pneg %p118
      %p211 = pneg %p147
      %p212 = pneg %p144
      %s213 = smul.u32 16, %s16
      %p214 = scmp.lt.s32.totalorder %s213, 31
      %s215 = scalar_select %p214, %s213, 31
      %s216 = smul.addr %s215, 8
      %s217 = scalar_lea.vmem %s5, %s216
      %s218 = smul.u32 16, %s16
      %p219 = scmp.lt.s32.totalorder %s218, 31
      %s220 = scalar_select %p219, %s218, 31
      %s221 = smul.addr %s220, 7
      %s222 = smul.addr %s221, 8
      %s223 = scalar_lea.vmem %s0, %s222
      %s224 = smul.u32 16, %s16
      %s225 = smul.u32 16, %s16
      %p226 = scmp.lt.s32.totalorder %s225, 31
      %s227 = scalar_select %p226, %s225, 31
      %s228 = smul.addr %s227, 8
      %s229 = scalar_lea.vmem %s5, %s228
      %s230 = smul.u32 16, %s16
      %v232 = vld [vmem:[%s223] sm:$0xff]
      %v233 = vld [vmem:[%s223 + $0x8] sm:$0xff]
      %v234 = vld [vmem:[%s223 + $0x10] sm:$0xff]
      %v235 = vld [vmem:[%s223 + $0x18] sm:$0xff]
      %v236 = vld [vmem:[%s223 + $0x20] sm:$0xff]
      %v237 = vld [vmem:[%s223 + $0x28] sm:$0xff]
      %v238 = vld [vmem:[%s223 + $0x30] sm:$0xff]
      %v239 = vld [vmem:[%s223 + $0x38] sm:$0xff]
      %v240 = vld [vmem:[%s223 + $0x40] sm:$0xff]
      %v241 = vld [vmem:[%s223 + $0x48] sm:$0xff]
      %v242 = vld [vmem:[%s223 + $0x50] sm:$0xff]
      %v243 = vld [vmem:[%s223 + $0x58] sm:$0xff]
      %v244 = vld [vmem:[%s223 + $0x60] sm:$0xff]
      %v245 = vld [vmem:[%s223 + $0x68] sm:$0xff]
      %v246 = vld [vmem:[%s223 + $0x70] sm:$0xff]
      %v247 = vld [vmem:[%s223 + $0x78] sm:$0xff]
      %v248 = vld [vmem:[%s223 + $0x80] sm:$0xff]
      %v249 = vld [vmem:[%s223 + $0x88] sm:$0xff]
      %v250 = vld [vmem:[%s223 + $0x90] sm:$0xff]
      %v251 = vld [vmem:[%s223 + $0x98] sm:$0xff]
      %v252 = vld [vmem:[%s223 + $0xa0] sm:$0xff]
      %v253 = vld [vmem:[%s223 + $0xa8] sm:$0xff]
      %v254 = vld [vmem:[%s223 + $0xb0] sm:$0xff]
      %v255 = vld [vmem:[%s223 + $0xb8] sm:$0xff]
      %v256 = vld [vmem:[%s223 + $0xc0] sm:$0xff]
      %v257 = vld [vmem:[%s223 + $0xc8] sm:$0xff]
      %v258 = vld [vmem:[%s223 + $0xd0] sm:$0xff]
      %v259 = vld [vmem:[%s223 + $0xd8] sm:$0xff]
      %v260 = vld [vmem:[%s223 + $0xe0] sm:$0xff]
      %v261 = vld [vmem:[%s223 + $0xe8] sm:$0xff]
      %v262 = vld [vmem:[%s223 + $0xf0] sm:$0xff]
      %v263 = vld [vmem:[%s223 + $0xf8] sm:$0xff]
      %v264 = vld [vmem:[%s223 + $0x100] sm:$0xff]
      %v265 = vld [vmem:[%s223 + $0x108] sm:$0xff]
      %v266 = vld [vmem:[%s223 + $0x110] sm:$0xff]
      %v267 = vld [vmem:[%s223 + $0x118] sm:$0xff]
      %v268 = vld [vmem:[%s223 + $0x120] sm:$0xff]
      %v269 = vld [vmem:[%s223 + $0x128] sm:$0xff]
      %v270 = vld [vmem:[%s223 + $0x130] sm:$0xff]
      %v271 = vld [vmem:[%s223 + $0x138] sm:$0xff]
      %v272 = vld [vmem:[%s223 + $0x140] sm:$0xff]
      %v273 = vld [vmem:[%s223 + $0x148] sm:$0xff]
      %v274 = vld [vmem:[%s223 + $0x150] sm:$0xff]
      %v275 = vld [vmem:[%s223 + $0x158] sm:$0xff]
      %v276 = vld [vmem:[%s223 + $0x160] sm:$0xff]
      %v277 = vld [vmem:[%s223 + $0x168] sm:$0xff]
      %v278 = vld [vmem:[%s223 + $0x170] sm:$0xff]
      %v279 = vld [vmem:[%s223 + $0x178] sm:$0xff]
      %v280 = vld [vmem:[%s223 + $0x180] sm:$0xff]
      %v281 = vld [vmem:[%s223 + $0x188] sm:$0xff]
      %v282 = vld [vmem:[%s223 + $0x190] sm:$0xff]
      %v283 = vld [vmem:[%s223 + $0x198] sm:$0xff]
      %v284 = vld [vmem:[%s223 + $0x1a0] sm:$0xff]
      %v285 = vld [vmem:[%s223 + $0x1a8] sm:$0xff]
      %v286 = vld [vmem:[%s223 + $0x1b0] sm:$0xff]
      %v287 = vld [vmem:[%s223 + $0x1b8] sm:$0xff]
      %v288 = vld [vmem:[%s223 + $0x1c0] sm:$0xff]
      %v289 = vld [vmem:[%s223 + $0x1c8] sm:$0xff]
      %v290 = vld [vmem:[%s223 + $0x1d0] sm:$0xff]
      %v291 = vld [vmem:[%s223 + $0x1d8] sm:$0xff]
      %v292 = vld [vmem:[%s223 + $0x1e0] sm:$0xff]
      %v293 = vld [vmem:[%s223 + $0x1e8] sm:$0xff]
      %v294 = vld [vmem:[%s223 + $0x1f0] sm:$0xff]
      %v295 = vld [vmem:[%s223 + $0x1f8] sm:$0xff]
      %v296 = vld [vmem:[%s223 + $0x200] sm:$0xff]
      %v297 = vld [vmem:[%s223 + $0x208] sm:$0xff]
      %v298 = vld [vmem:[%s223 + $0x210] sm:$0xff]
      %v299 = vld [vmem:[%s223 + $0x218] sm:$0xff]
      %v300 = vld [vmem:[%s223 + $0x220] sm:$0xff]
      %v301 = vld [vmem:[%s223 + $0x228] sm:$0xff]
      %v302 = vld [vmem:[%s223 + $0x230] sm:$0xff]
      %v303 = vld [vmem:[%s223 + $0x238] sm:$0xff]
      %v304 = vld [vmem:[%s223 + $0x240] sm:$0xff]
      %v305 = vld [vmem:[%s223 + $0x248] sm:$0xff]
      %v306 = vld [vmem:[%s223 + $0x250] sm:$0xff]
      %v307 = vld [vmem:[%s223 + $0x258] sm:$0xff]
      %v308 = vld [vmem:[%s223 + $0x260] sm:$0xff]
      %v309 = vld [vmem:[%s223 + $0x268] sm:$0xff]
      %v310 = vld [vmem:[%s223 + $0x270] sm:$0xff]
      %v311 = vld [vmem:[%s223 + $0x278] sm:$0xff]
      %v312 = vld [vmem:[%s223 + $0x280] sm:$0xff]
      %v313 = vld [vmem:[%s223 + $0x288] sm:$0xff]
      %v314 = vld [vmem:[%s223 + $0x290] sm:$0xff]
      %v315 = vld [vmem:[%s223 + $0x298] sm:$0xff]
      %v316 = vld [vmem:[%s223 + $0x2a0] sm:$0xff]
      %v317 = vld [vmem:[%s223 + $0x2a8] sm:$0xff]
      %v318 = vld [vmem:[%s223 + $0x2b0] sm:$0xff]
      %v319 = vld [vmem:[%s223 + $0x2b8] sm:$0xff]
      %v320 = vld [vmem:[%s223 + $0x2c0] sm:$0xff]
      %v321 = vld [vmem:[%s223 + $0x2c8] sm:$0xff]
      %v322 = vld [vmem:[%s223 + $0x2d0] sm:$0xff]
      %v323 = vld [vmem:[%s223 + $0x2d8] sm:$0xff]
      %v324 = vld [vmem:[%s223 + $0x2e0] sm:$0xff]
      %v325 = vld [vmem:[%s223 + $0x2e8] sm:$0xff]
      %v326 = vld [vmem:[%s223 + $0x2f0] sm:$0xff]
      %v327 = vld [vmem:[%s223 + $0x2f8] sm:$0xff]
      %v328 = vld [vmem:[%s223 + $0x300] sm:$0xff]
      %v329 = vld [vmem:[%s223 + $0x308] sm:$0xff]
      %v330 = vld [vmem:[%s223 + $0x310] sm:$0xff]
      %v331 = vld [vmem:[%s223 + $0x318] sm:$0xff]
      %v332 = vld [vmem:[%s223 + $0x320] sm:$0xff]
      %v333 = vld [vmem:[%s223 + $0x328] sm:$0xff]
      %v334 = vld [vmem:[%s223 + $0x330] sm:$0xff]
      %v335 = vld [vmem:[%s223 + $0x338] sm:$0xff]
      %v336 = vld [vmem:[%s223 + $0x340] sm:$0xff]
      %v337 = vld [vmem:[%s223 + $0x348] sm:$0xff]
      %v338 = vld [vmem:[%s223 + $0x350] sm:$0xff]
      %v339 = vld [vmem:[%s223 + $0x358] sm:$0xff]
      %v340 = vld [vmem:[%s223 + $0x360] sm:$0xff]
      %v341 = vld [vmem:[%s223 + $0x368] sm:$0xff]
      %v342 = vld [vmem:[%s223 + $0x370] sm:$0xff]
      %v343 = vld [vmem:[%s223 + $0x378] sm:$0xff]
      %v344 = vpack.c.bf16 %v239, %v232
      %v345 = vpack.c.bf16 %v240, %v233
      %v346 = vpack.c.bf16 %v241, %v234
      %v347 = vpack.c.bf16 %v242, %v235
      %v348 = vpack.c.bf16 %v243, %v236
      %v349 = vpack.c.bf16 %v244, %v237
      %v350 = vpack.c.bf16 %v245, %v238
      %v351 = vpack.c.bf16 %v253, %v246
      %v352 = vpack.c.bf16 %v254, %v247
      %v353 = vpack.c.bf16 %v255, %v248
      %v354 = vpack.c.bf16 %v256, %v249
      %v355 = vpack.c.bf16 %v257, %v250
      %v356 = vpack.c.bf16 %v258, %v251
      %v357 = vpack.c.bf16 %v259, %v252
      %v358 = vpack.c.bf16 %v267, %v260
      %v359 = vpack.c.bf16 %v268, %v261
      %v360 = vpack.c.bf16 %v269, %v262
      %v361 = vpack.c.bf16 %v270, %v263
      %v362 = vpack.c.bf16 %v271, %v264
      %v363 = vpack.c.bf16 %v272, %v265
      %v364 = vpack.c.bf16 %v273, %v266
      %v365 = vpack.c.bf16 %v281, %v274
      %v366 = vpack.c.bf16 %v282, %v275
      %v367 = vpack.c.bf16 %v283, %v276
      %v368 = vpack.c.bf16 %v284, %v277
      %v369 = vpack.c.bf16 %v285, %v278
      %v370 = vpack.c.bf16 %v286, %v279
      %v371 = vpack.c.bf16 %v287, %v280
      %v372 = vpack.c.bf16 %v295, %v288
      %v373 = vpack.c.bf16 %v296, %v289
      %v374 = vpack.c.bf16 %v297, %v290
      %v375 = vpack.c.bf16 %v298, %v291
      %v376 = vpack.c.bf16 %v299, %v292
      %v377 = vpack.c.bf16 %v300, %v293
      %v378 = vpack.c.bf16 %v301, %v294
      %v379 = vpack.c.bf16 %v309, %v302
      %v380 = vpack.c.bf16 %v310, %v303
      %v381 = vpack.c.bf16 %v311, %v304
      %v382 = vpack.c.bf16 %v312, %v305
      %v383 = vpack.c.bf16 %v313, %v306
      %v384 = vpack.c.bf16 %v314, %v307
      %v385 = vpack.c.bf16 %v315, %v308
      %v386 = vpack.c.bf16 %v323, %v316
      %v387 = vpack.c.bf16 %v324, %v317
      %v388 = vpack.c.bf16 %v325, %v318
      %v389 = vpack.c.bf16 %v326, %v319
      %v390 = vpack.c.bf16 %v327, %v320
      %v391 = vpack.c.bf16 %v328, %v321
      %v392 = vpack.c.bf16 %v329, %v322
      %v393 = vpack.c.bf16 %v337, %v330
      %v394 = vpack.c.bf16 %v338, %v331
      %v395 = vpack.c.bf16 %v339, %v332
      %v396 = vpack.c.bf16 %v340, %v333
      %v397 = vpack.c.bf16 %v341, %v334
      %v398 = vpack.c.bf16 %v342, %v335
      %v399 = vpack.c.bf16 %v343, %v336
      %v400 = vld [vmem:[%s1] sm:$0xff]
      %v401 = vld [vmem:[%s1 + $0x8] sm:$0xff]
      %v402 = vld [vmem:[%s1 + $0x10] sm:$0xff]
      %v403 = vld [vmem:[%s1 + $0x18] sm:$0xff]
      %v404 = vld [vmem:[%s1 + $0x20] sm:$0xff]
      %v405 = vld [vmem:[%s1 + $0x28] sm:$0xff]
      %v406 = vld [vmem:[%s1 + $0x30] sm:$0xff]
      %v407 = vld [vmem:[%s1 + $0x38] sm:$0xff]
      %v408 = vld [vmem:[%s1 + $0x40] sm:$0xff]
      %v409 = vld [vmem:[%s1 + $0x48] sm:$0xff]
      %v410 = vld [vmem:[%s1 + $0x50] sm:$0xff]
      %v411 = vld [vmem:[%s1 + $0x58] sm:$0xff]
      %v412 = vld [vmem:[%s1 + $0x60] sm:$0xff]
      %v413 = vld [vmem:[%s1 + $0x68] sm:$0xff]
      %v414 = vld [vmem:[%s1 + $0x70] sm:$0xff]
      %v415 = vld [vmem:[%s1 + $0x78] sm:$0xff]
      %v416 = vld [vmem:[%s1 + $0x80] sm:$0xff]
      %v417 = vld [vmem:[%s1 + $0x88] sm:$0xff]
      %v418 = vld [vmem:[%s1 + $0x90] sm:$0xff]
      %v419 = vld [vmem:[%s1 + $0x98] sm:$0xff]
      %v420 = vld [vmem:[%s1 + $0xa0] sm:$0xff]
      %v421 = vld [vmem:[%s1 + $0xa8] sm:$0xff]
      %v422 = vld [vmem:[%s1 + $0xb0] sm:$0xff]
      %v423 = vld [vmem:[%s1 + $0xb8] sm:$0xff]
      %v424 = vld [vmem:[%s1 + $0xc0] sm:$0xff]
      %v425 = vld [vmem:[%s1 + $0xc8] sm:$0xff]
      %v426 = vld [vmem:[%s1 + $0xd0] sm:$0xff]
      %v427 = vld [vmem:[%s1 + $0xd8] sm:$0xff]
      %v428 = vld [vmem:[%s1 + $0xe0] sm:$0xff]
      %v429 = vld [vmem:[%s1 + $0xe8] sm:$0xff]
      %v430 = vld [vmem:[%s1 + $0xf0] sm:$0xff]
      %v431 = vld [vmem:[%s1 + $0xf8] sm:$0xff]
      %v432 = vld [vmem:[%s1 + $0x100] sm:$0xff]
      %v433 = vld [vmem:[%s1 + $0x108] sm:$0xff]
      %v434 = vld [vmem:[%s1 + $0x110] sm:$0xff]
      %v435 = vld [vmem:[%s1 + $0x118] sm:$0xff]
      %v436 = vld [vmem:[%s1 + $0x120] sm:$0xff]
      %v437 = vld [vmem:[%s1 + $0x128] sm:$0xff]
      %v438 = vld [vmem:[%s1 + $0x130] sm:$0xff]
      %v439 = vld [vmem:[%s1 + $0x138] sm:$0xff]
      %v440 = vld [vmem:[%s1 + $0x140] sm:$0xff]
      %v441 = vld [vmem:[%s1 + $0x148] sm:$0xff]
      %v442 = vld [vmem:[%s1 + $0x150] sm:$0xff]
      %v443 = vld [vmem:[%s1 + $0x158] sm:$0xff]
      %v444 = vld [vmem:[%s1 + $0x160] sm:$0xff]
      %v445 = vld [vmem:[%s1 + $0x168] sm:$0xff]
      %v446 = vld [vmem:[%s1 + $0x170] sm:$0xff]
      %v447 = vld [vmem:[%s1 + $0x178] sm:$0xff]
      %v448 = vld [vmem:[%s1 + $0x180] sm:$0xff]
      %v449 = vld [vmem:[%s1 + $0x188] sm:$0xff]
      %v450 = vld [vmem:[%s1 + $0x190] sm:$0xff]
      %v451 = vld [vmem:[%s1 + $0x198] sm:$0xff]
      %v452 = vld [vmem:[%s1 + $0x1a0] sm:$0xff]
      %v453 = vld [vmem:[%s1 + $0x1a8] sm:$0xff]
      %v454 = vld [vmem:[%s1 + $0x1b0] sm:$0xff]
      %v455 = vld [vmem:[%s1 + $0x1b8] sm:$0xff]
      %v456 = vld [vmem:[%s1 + $0x1c0] sm:$0xff]
      %v457 = vld [vmem:[%s1 + $0x1c8] sm:$0xff]
      %v458 = vld [vmem:[%s1 + $0x1d0] sm:$0xff]
      %v459 = vld [vmem:[%s1 + $0x1d8] sm:$0xff]
      %v460 = vld [vmem:[%s1 + $0x1e0] sm:$0xff]
      %v461 = vld [vmem:[%s1 + $0x1e8] sm:$0xff]
      %v462 = vld [vmem:[%s1 + $0x1f0] sm:$0xff]
      %v463 = vld [vmem:[%s1 + $0x1f8] sm:$0xff]
      %v464 = vld [vmem:[%s1 + $0x200] sm:$0xff]
      %v465 = vld [vmem:[%s1 + $0x208] sm:$0xff]
      %v466 = vld [vmem:[%s1 + $0x210] sm:$0xff]
      %v467 = vld [vmem:[%s1 + $0x218] sm:$0xff]
      %v468 = vld [vmem:[%s1 + $0x220] sm:$0xff]
      %v469 = vld [vmem:[%s1 + $0x228] sm:$0xff]
      %v470 = vld [vmem:[%s1 + $0x230] sm:$0xff]
      %v471 = vld [vmem:[%s1 + $0x238] sm:$0xff]
      %v472 = vld [vmem:[%s1 + $0x240] sm:$0xff]
      %v473 = vld [vmem:[%s1 + $0x248] sm:$0xff]
      %v474 = vld [vmem:[%s1 + $0x250] sm:$0xff]
      %v475 = vld [vmem:[%s1 + $0x258] sm:$0xff]
      %v476 = vld [vmem:[%s1 + $0x260] sm:$0xff]
      %v477 = vld [vmem:[%s1 + $0x268] sm:$0xff]
      %v478 = vld [vmem:[%s1 + $0x270] sm:$0xff]
      %v479 = vld [vmem:[%s1 + $0x278] sm:$0xff]
      %v480 = vld [vmem:[%s1 + $0x280] sm:$0xff]
      %v481 = vld [vmem:[%s1 + $0x288] sm:$0xff]
      %v482 = vld [vmem:[%s1 + $0x290] sm:$0xff]
      %v483 = vld [vmem:[%s1 + $0x298] sm:$0xff]
      %v484 = vld [vmem:[%s1 + $0x2a0] sm:$0xff]
      %v485 = vld [vmem:[%s1 + $0x2a8] sm:$0xff]
      %v486 = vld [vmem:[%s1 + $0x2b0] sm:$0xff]
      %v487 = vld [vmem:[%s1 + $0x2b8] sm:$0xff]
      %v488 = vld [vmem:[%s1 + $0x2c0] sm:$0xff]
      %v489 = vld [vmem:[%s1 + $0x2c8] sm:$0xff]
      %v490 = vld [vmem:[%s1 + $0x2d0] sm:$0xff]
      %v491 = vld [vmem:[%s1 + $0x2d8] sm:$0xff]
      %v492 = vld [vmem:[%s1 + $0x2e0] sm:$0xff]
      %v493 = vld [vmem:[%s1 + $0x2e8] sm:$0xff]
      %v494 = vld [vmem:[%s1 + $0x2f0] sm:$0xff]
      %v495 = vld [vmem:[%s1 + $0x2f8] sm:$0xff]
      %v496 = vld [vmem:[%s1 + $0x300] sm:$0xff]
      %v497 = vld [vmem:[%s1 + $0x308] sm:$0xff]
      %v498 = vld [vmem:[%s2] sm:$0x3]
      %v500 = vperm.slane %v498, 0
      %v501 = vperm.slane %v498, 1
      %v602 = vunpack.c.l.b16 %v400
      %v603 = vunpack.c.h.b16 %v400
      %v604 = vunpack.c.l.b16 %v401
      %v605 = vunpack.c.h.b16 %v401
      %v606 = vunpack.c.l.b16 %v402
      %v607 = vunpack.c.h.b16 %v402
      %v608 = vunpack.c.l.b16 %v403
      %v609 = vunpack.c.h.b16 %v403
      %v610 = vunpack.c.l.b16 %v404
      %v611 = vunpack.c.h.b16 %v404
      %v612 = vunpack.c.l.b16 %v405
      %v613 = vunpack.c.h.b16 %v405
      %v614 = vunpack.c.l.b16 %v406
      %v615 = vunpack.c.h.b16 %v406
      %v616 = vunpack.c.l.b16 %v407
      %v617 = vunpack.c.h.b16 %v407
      %v618 = vunpack.c.l.b16 %v408
      %v619 = vunpack.c.h.b16 %v408
      %v620 = vunpack.c.l.b16 %v409
      %v621 = vunpack.c.h.b16 %v409
      %v622 = vunpack.c.l.b16 %v410
      %v623 = vunpack.c.h.b16 %v410
      %v624 = vunpack.c.l.b16 %v411
      %v625 = vunpack.c.h.b16 %v411
      %v626 = vunpack.c.l.b16 %v412
      %v627 = vunpack.c.h.b16 %v412
      %v628 = vunpack.c.l.b16 %v413
      %v629 = vunpack.c.h.b16 %v413
      %v630 = vunpack.c.l.b16 %v414
      %v631 = vunpack.c.h.b16 %v414
      %v632 = vunpack.c.l.b16 %v415
      %v633 = vunpack.c.h.b16 %v415
      %v634 = vunpack.c.l.b16 %v416
      %v635 = vunpack.c.h.b16 %v416
      %v636 = vunpack.c.l.b16 %v417
      %v637 = vunpack.c.h.b16 %v417
      %v638 = vunpack.c.l.b16 %v418
      %v639 = vunpack.c.h.b16 %v418
      %v640 = vunpack.c.l.b16 %v419
      %v641 = vunpack.c.h.b16 %v419
      %v642 = vunpack.c.l.b16 %v420
      %v643 = vunpack.c.h.b16 %v420
      %v644 = vunpack.c.l.b16 %v421
      %v645 = vunpack.c.h.b16 %v421
      %v646 = vunpack.c.l.b16 %v422
      %v647 = vunpack.c.h.b16 %v422
      %v648 = vunpack.c.l.b16 %v423
      %v649 = vunpack.c.h.b16 %v423
      %v650 = vunpack.c.l.b16 %v424
      %v651 = vunpack.c.h.b16 %v424
      %v652 = vunpack.c.l.b16 %v425
      %v653 = vunpack.c.h.b16 %v425
      %v654 = vunpack.c.l.b16 %v426
      %v655 = vunpack.c.h.b16 %v426
      %v656 = vunpack.c.l.b16 %v427
      %v657 = vunpack.c.h.b16 %v427
      %v658 = vunpack.c.l.b16 %v428
      %v659 = vunpack.c.h.b16 %v428
      %v660 = vunpack.c.l.b16 %v429
      %v661 = vunpack.c.h.b16 %v429
      %v662 = vunpack.c.l.b16 %v430
      %v663 = vunpack.c.h.b16 %v430
      %v664 = vunpack.c.l.b16 %v431
      %v665 = vunpack.c.h.b16 %v431
      %v666 = vunpack.c.l.b16 %v432
      %v667 = vunpack.c.h.b16 %v432
      %v668 = vunpack.c.l.b16 %v433
      %v669 = vunpack.c.h.b16 %v433
      %v670 = vunpack.c.l.b16 %v434
      %v671 = vunpack.c.h.b16 %v434
      %v672 = vunpack.c.l.b16 %v435
      %v673 = vunpack.c.h.b16 %v435
      %v674 = vunpack.c.l.b16 %v436
      %v675 = vunpack.c.h.b16 %v436
      %v676 = vunpack.c.l.b16 %v437
      %v677 = vunpack.c.h.b16 %v437
      %v678 = vunpack.c.l.b16 %v438
      %v679 = vunpack.c.h.b16 %v438
      %v680 = vunpack.c.l.b16 %v439
      %v681 = vunpack.c.h.b16 %v439
      %v682 = vunpack.c.l.b16 %v440
      %v683 = vunpack.c.h.b16 %v440
      %v684 = vunpack.c.l.b16 %v441
      %v685 = vunpack.c.h.b16 %v441
      %v686 = vunpack.c.l.b16 %v442
      %v687 = vunpack.c.h.b16 %v442
      %v688 = vunpack.c.l.b16 %v443
      %v689 = vunpack.c.h.b16 %v443
      %v690 = vunpack.c.l.b16 %v444
      %v691 = vunpack.c.h.b16 %v444
      %v692 = vunpack.c.l.b16 %v445
      %v693 = vunpack.c.h.b16 %v445
      %v694 = vunpack.c.l.b16 %v446
      %v695 = vunpack.c.h.b16 %v446
      %v696 = vunpack.c.l.b16 %v447
      %v697 = vunpack.c.h.b16 %v447
      %v698 = vunpack.c.l.b16 %v448
      %v699 = vunpack.c.h.b16 %v448
      %v700 = vunpack.c.l.b16 %v449
      %v701 = vunpack.c.h.b16 %v449
      %v702 = vunpack.c.l.b16 %v450
      %v703 = vunpack.c.h.b16 %v450
      %v704 = vunpack.c.l.b16 %v451
      %v705 = vunpack.c.h.b16 %v451
      %v706 = vunpack.c.l.b16 %v452
      %v707 = vunpack.c.h.b16 %v452
      %v708 = vunpack.c.l.b16 %v453
      %v709 = vunpack.c.h.b16 %v453
      %v710 = vunpack.c.l.b16 %v454
      %v711 = vunpack.c.h.b16 %v454
      %v712 = vunpack.c.l.b16 %v455
      %v713 = vunpack.c.h.b16 %v455
      %v714 = vunpack.c.l.b16 %v456
      %v715 = vunpack.c.h.b16 %v456
      %v716 = vunpack.c.l.b16 %v457
      %v717 = vunpack.c.h.b16 %v457
      %v718 = vunpack.c.l.b16 %v458
      %v719 = vunpack.c.h.b16 %v458
      %v720 = vunpack.c.l.b16 %v459
      %v721 = vunpack.c.h.b16 %v459
      %v722 = vunpack.c.l.b16 %v460
      %v723 = vunpack.c.h.b16 %v460
      %v724 = vunpack.c.l.b16 %v461
      %v725 = vunpack.c.h.b16 %v461
      %v726 = vunpack.c.l.b16 %v462
      %v727 = vunpack.c.h.b16 %v462
      %v728 = vunpack.c.l.b16 %v463
      %v729 = vunpack.c.h.b16 %v463
      %v730 = vunpack.c.l.b16 %v464
      %v731 = vunpack.c.h.b16 %v464
      %v732 = vunpack.c.l.b16 %v465
      %v733 = vunpack.c.h.b16 %v465
      %v734 = vunpack.c.l.b16 %v466
      %v735 = vunpack.c.h.b16 %v466
      %v736 = vunpack.c.l.b16 %v467
      %v737 = vunpack.c.h.b16 %v467
      %v738 = vunpack.c.l.b16 %v468
      %v739 = vunpack.c.h.b16 %v468
      %v740 = vunpack.c.l.b16 %v469
      %v741 = vunpack.c.h.b16 %v469
      %v742 = vunpack.c.l.b16 %v470
      %v743 = vunpack.c.h.b16 %v470
      %v744 = vunpack.c.l.b16 %v471
      %v745 = vunpack.c.h.b16 %v471
      %v746 = vunpack.c.l.b16 %v472
      %v747 = vunpack.c.h.b16 %v472
      %v748 = vunpack.c.l.b16 %v473
      %v749 = vunpack.c.h.b16 %v473
      %v750 = vunpack.c.l.b16 %v474
      %v751 = vunpack.c.h.b16 %v474
      %v752 = vunpack.c.l.b16 %v475
      %v753 = vunpack.c.h.b16 %v475
      %v754 = vunpack.c.l.b16 %v476
      %v755 = vunpack.c.h.b16 %v476
      %v756 = vunpack.c.l.b16 %v477
      %v757 = vunpack.c.h.b16 %v477
      %v758 = vunpack.c.l.b16 %v478
      %v759 = vunpack.c.h.b16 %v478
      %v760 = vunpack.c.l.b16 %v479
      %v761 = vunpack.c.h.b16 %v479
      %v762 = vunpack.c.l.b16 %v480
      %v763 = vunpack.c.h.b16 %v480
      %v764 = vunpack.c.l.b16 %v481
      %v765 = vunpack.c.h.b16 %v481
      %v766 = vunpack.c.l.b16 %v482
      %v767 = vunpack.c.h.b16 %v482
      %v768 = vunpack.c.l.b16 %v483
      %v769 = vunpack.c.h.b16 %v483
      %v770 = vunpack.c.l.b16 %v484
      %v771 = vunpack.c.h.b16 %v484
      %v772 = vunpack.c.l.b16 %v485
      %v773 = vunpack.c.h.b16 %v485
      %v774 = vunpack.c.l.b16 %v486
      %v775 = vunpack.c.h.b16 %v486
      %v776 = vunpack.c.l.b16 %v487
      %v777 = vunpack.c.h.b16 %v487
      %v778 = vunpack.c.l.b16 %v488
      %v779 = vunpack.c.h.b16 %v488
      %v780 = vunpack.c.l.b16 %v489
      %v781 = vunpack.c.h.b16 %v489
      %v782 = vunpack.c.l.b16 %v490
      %v783 = vunpack.c.h.b16 %v490
      %v784 = vunpack.c.l.b16 %v491
      %v785 = vunpack.c.h.b16 %v491
      %v786 = vunpack.c.l.b16 %v492
      %v787 = vunpack.c.h.b16 %v492
      %v788 = vunpack.c.l.b16 %v493
      %v789 = vunpack.c.h.b16 %v493
      %v790 = vunpack.c.l.b16 %v494
      %v791 = vunpack.c.h.b16 %v494
      %v792 = vunpack.c.l.b16 %v495
      %v793 = vunpack.c.h.b16 %v495
      %v794 = vunpack.c.l.b16 %v496
      %v795 = vunpack.c.h.b16 %v496
      %v796 = vunpack.c.l.b16 %v497
      %v797 = vunpack.c.h.b16 %v497
      %v798 = vpack.c.b16 %v604, %v602
      %v799 = vpack.c.b16 %v605, %v603
      %v800 = vpack.c.b16 %v608, %v606
      %v801 = vpack.c.b16 %v609, %v607
      %v802 = vpack.c.b16 %v612, %v610
      %v803 = vpack.c.b16 %v613, %v611
      %v804 = vpack.c.b16 %v616, %v614
      %v805 = vpack.c.b16 %v617, %v615
      %v806 = vpack.c.b16 %v620, %v618
      %v807 = vpack.c.b16 %v621, %v619
      %v808 = vpack.c.b16 %v624, %v622
      %v809 = vpack.c.b16 %v625, %v623
      %v810 = vpack.c.b16 %v628, %v626
      %v811 = vpack.c.b16 %v629, %v627
      %v812 = vpack.c.b16 %v632, %v630
      %v813 = vpack.c.b16 %v633, %v631
      %v814 = vpack.c.b16 %v636, %v634
      %v815 = vpack.c.b16 %v637, %v635
      %v816 = vpack.c.b16 %v640, %v638
      %v817 = vpack.c.b16 %v641, %v639
      %v818 = vpack.c.b16 %v644, %v642
      %v819 = vpack.c.b16 %v645, %v643
      %v820 = vpack.c.b16 %v648, %v646
      %v821 = vpack.c.b16 %v649, %v647
      %v822 = vpack.c.b16 %v652, %v650
      %v823 = vpack.c.b16 %v653, %v651
      %v824 = vpack.c.b16 %v656, %v654
      %v825 = vpack.c.b16 %v657, %v655
      %v826 = vpack.c.b16 %v660, %v658
      %v827 = vpack.c.b16 %v661, %v659
      %v828 = vpack.c.b16 %v664, %v662
      %v829 = vpack.c.b16 %v665, %v663
      %v830 = vpack.c.b16 %v668, %v666
      %v831 = vpack.c.b16 %v669, %v667
      %v832 = vpack.c.b16 %v672, %v670
      %v833 = vpack.c.b16 %v673, %v671
      %v834 = vpack.c.b16 %v676, %v674
      %v835 = vpack.c.b16 %v677, %v675
      %v836 = vpack.c.b16 %v680, %v678
      %v837 = vpack.c.b16 %v681, %v679
      %v838 = vpack.c.b16 %v684, %v682
      %v839 = vpack.c.b16 %v685, %v683
      %v840 = vpack.c.b16 %v688, %v686
      %v841 = vpack.c.b16 %v689, %v687
      %v842 = vpack.c.b16 %v692, %v690
      %v843 = vpack.c.b16 %v693, %v691
      %v844 = vpack.c.b16 %v696, %v694
      %v845 = vpack.c.b16 %v697, %v695
      %v846 = vpack.c.b16 %v700, %v698
      %v847 = vpack.c.b16 %v701, %v699
      %v848 = vpack.c.b16 %v704, %v702
      %v849 = vpack.c.b16 %v705, %v703
      %v850 = vpack.c.b16 %v708, %v706
      %v851 = vpack.c.b16 %v709, %v707
      %v852 = vpack.c.b16 %v712, %v710
      %v853 = vpack.c.b16 %v713, %v711
      %v854 = vpack.c.b16 %v716, %v714
      %v855 = vpack.c.b16 %v717, %v715
      %v856 = vpack.c.b16 %v720, %v718
      %v857 = vpack.c.b16 %v721, %v719
      %v858 = vpack.c.b16 %v724, %v722
      %v859 = vpack.c.b16 %v725, %v723
      %v860 = vpack.c.b16 %v728, %v726
      %v861 = vpack.c.b16 %v729, %v727
      %v862 = vpack.c.b16 %v732, %v730
      %v863 = vpack.c.b16 %v733, %v731
      %v864 = vpack.c.b16 %v736, %v734
      %v865 = vpack.c.b16 %v737, %v735
      %v866 = vpack.c.b16 %v740, %v738
      %v867 = vpack.c.b16 %v741, %v739
      %v868 = vpack.c.b16 %v744, %v742
      %v869 = vpack.c.b16 %v745, %v743
      %v870 = vpack.c.b16 %v748, %v746
      %v871 = vpack.c.b16 %v749, %v747
      %v872 = vpack.c.b16 %v752, %v750
      %v873 = vpack.c.b16 %v753, %v751
      %v874 = vpack.c.b16 %v756, %v754
      %v875 = vpack.c.b16 %v757, %v755
      %v876 = vpack.c.b16 %v760, %v758
      %v877 = vpack.c.b16 %v761, %v759
      %v878 = vpack.c.b16 %v764, %v762
      %v879 = vpack.c.b16 %v765, %v763
      %v880 = vpack.c.b16 %v768, %v766
      %v881 = vpack.c.b16 %v769, %v767
      %v882 = vpack.c.b16 %v772, %v770
      %v883 = vpack.c.b16 %v773, %v771
      %v884 = vpack.c.b16 %v776, %v774
      %v885 = vpack.c.b16 %v777, %v775
      %v886 = vpack.c.b16 %v780, %v778
      %v887 = vpack.c.b16 %v781, %v779
      %v888 = vpack.c.b16 %v784, %v782
      %v889 = vpack.c.b16 %v785, %v783
      %v890 = vpack.c.b16 %v788, %v786
      %v891 = vpack.c.b16 %v789, %v787
      %v892 = vpack.c.b16 %v792, %v790
      %v893 = vpack.c.b16 %v793, %v791
      %v894 = vpack.c.b16 %v796, %v794
      %v895 = vpack.c.b16 %v797, %v795
      %vm994 = vcmask 130048
      %v996 = vsel %vm994, %v350, 0
      %v999 = vsel %vm994, %v357, 0
      %v1002 = vsel %vm994, %v364, 0
      %v1005 = vsel %vm994, %v371, 0
      %v1008 = vsel %vm994, %v378, 0
      %v1011 = vsel %vm994, %v385, 0
      %v1014 = vsel %vm994, %v392, 0
      %v1017 = vsel %vm994, %v399, 0
      %1019 = vmatpush.bf16.msra.mxu0 %v812
      %1020 = vmatpush.bf16.msra.mxu0 %v810
      %1021 = vmatpush.bf16.msra.mxu0 %v808
      %1022 = vmatpush.bf16.msra.mxu0 %v806
      %1023 = vmatpush.bf16.msra.mxu0 %v804
      %1024 = vmatpush.bf16.msra.mxu0 %v802
      %1025 = vmatpush.bf16.msra.mxu0 %v800
      %1026 = vmatpush.bf16.msra.mxu0 %v798
      %1027 = vmatmul.bf16.gmra.mxu0 %v344
      %v1028 = vpop.f32.mrf.mxu0
      %v1029 = vadd.f32 %v500, %v1028
      %v1030 = vpop.f32.mrf.mxu0
      %v1031 = vadd.f32 %v500, %v1030
      %1032 = vmatmul.bf16.gmra.mxu0 %v351
      %v1033 = vpop.f32.mrf.mxu0
      %v1034 = vadd.f32 %v500, %v1033
      %v1035 = vpop.f32.mrf.mxu0
      %v1036 = vadd.f32 %v500, %v1035
      %1037 = vmatmul.bf16.gmra.mxu0 %v358
      %v1038 = vpop.f32.mrf.mxu0
      %v1039 = vadd.f32 %v500, %v1038
      %v1040 = vpop.f32.mrf.mxu0
      %v1041 = vadd.f32 %v500, %v1040
      %1042 = vmatmul.bf16.gmra.mxu0 %v365
      %v1043 = vpop.f32.mrf.mxu0
      %v1044 = vadd.f32 %v500, %v1043
      %v1045 = vpop.f32.mrf.mxu0
      %v1046 = vadd.f32 %v500, %v1045
      %1047 = vmatmul.bf16.gmra.mxu0 %v372
      %v1048 = vpop.f32.mrf.mxu0
      %v1049 = vadd.f32 %v500, %v1048
      %v1050 = vpop.f32.mrf.mxu0
      %v1051 = vadd.f32 %v500, %v1050
      %1052 = vmatmul.bf16.gmra.mxu0 %v379
      %v1053 = vpop.f32.mrf.mxu0
      %v1054 = vadd.f32 %v500, %v1053
      %v1055 = vpop.f32.mrf.mxu0
      %v1056 = vadd.f32 %v500, %v1055
      %1057 = vmatmul.bf16.gmra.mxu0 %v386
      %v1058 = vpop.f32.mrf.mxu0
      %v1059 = vadd.f32 %v500, %v1058
      %v1060 = vpop.f32.mrf.mxu0
      %v1061 = vadd.f32 %v500, %v1060
      %1062 = vmatmul.bf16.gmra.mxu0 %v393
      %v1063 = vpop.f32.mrf.mxu0
      %v1064 = vadd.f32 %v500, %v1063
      %v1065 = vpop.f32.mrf.mxu0
      %v1066 = vadd.f32 %v500, %v1065
      %1067 = vdwg.mxu0
      %1068 = vmatpush.bf16.msra.mxu0 %v828
      %1069 = vmatpush.bf16.msra.mxu0 %v826
      %1070 = vmatpush.bf16.msra.mxu0 %v824
      %1071 = vmatpush.bf16.msra.mxu0 %v822
      %1072 = vmatpush.bf16.msra.mxu0 %v820
      %1073 = vmatpush.bf16.msra.mxu0 %v818
      %1074 = vmatpush.bf16.msra.mxu0 %v816
      %1075 = vmatpush.bf16.msra.mxu0 %v814
      %1076 = vmatmul.bf16.gmra.mxu0 %v345
      %v1077 = vpop.f32.mrf.mxu0
      %v1078 = vadd.f32 %v1029, %v1077
      %v1079 = vpop.f32.mrf.mxu0
      %v1080 = vadd.f32 %v1031, %v1079
      %1081 = vmatmul.bf16.gmra.mxu0 %v352
      %v1082 = vpop.f32.mrf.mxu0
      %v1083 = vadd.f32 %v1034, %v1082
      %v1084 = vpop.f32.mrf.mxu0
      %v1085 = vadd.f32 %v1036, %v1084
      %1086 = vmatmul.bf16.gmra.mxu0 %v359
      %v1087 = vpop.f32.mrf.mxu0
      %v1088 = vadd.f32 %v1039, %v1087
      %v1089 = vpop.f32.mrf.mxu0
      %v1090 = vadd.f32 %v1041, %v1089
      %1091 = vmatmul.bf16.gmra.mxu0 %v366
      %v1092 = vpop.f32.mrf.mxu0
      %v1093 = vadd.f32 %v1044, %v1092
      %v1094 = vpop.f32.mrf.mxu0
      %v1095 = vadd.f32 %v1046, %v1094
      %1096 = vmatmul.bf16.gmra.mxu0 %v373
      %v1097 = vpop.f32.mrf.mxu0
      %v1098 = vadd.f32 %v1049, %v1097
      %v1099 = vpop.f32.mrf.mxu0
      %v1100 = vadd.f32 %v1051, %v1099
      %1101 = vmatmul.bf16.gmra.mxu0 %v380
      %v1102 = vpop.f32.mrf.mxu0
      %v1103 = vadd.f32 %v1054, %v1102
      %v1104 = vpop.f32.mrf.mxu0
      %v1105 = vadd.f32 %v1056, %v1104
      %1106 = vmatmul.bf16.gmra.mxu0 %v387
      %v1107 = vpop.f32.mrf.mxu0
      %v1108 = vadd.f32 %v1059, %v1107
      %v1109 = vpop.f32.mrf.mxu0
      %v1110 = vadd.f32 %v1061, %v1109
      %1111 = vmatmul.bf16.gmra.mxu0 %v394
      %v1112 = vpop.f32.mrf.mxu0
      %v1113 = vadd.f32 %v1064, %v1112
      %v1114 = vpop.f32.mrf.mxu0
      %v1115 = vadd.f32 %v1066, %v1114
      %1116 = vdwg.mxu0
      %1117 = vmatpush.bf16.msra.mxu0 %v844
      %1118 = vmatpush.bf16.msra.mxu0 %v842
      %1119 = vmatpush.bf16.msra.mxu0 %v840
      %1120 = vmatpush.bf16.msra.mxu0 %v838
      %1121 = vmatpush.bf16.msra.mxu0 %v836
      %1122 = vmatpush.bf16.msra.mxu0 %v834
      %1123 = vmatpush.bf16.msra.mxu0 %v832
      %1124 = vmatpush.bf16.msra.mxu0 %v830
      %1125 = vmatmul.bf16.gmra.mxu0 %v346
      %v1126 = vpop.f32.mrf.mxu0
      %v1127 = vadd.f32 %v1078, %v1126
      %v1128 = vpop.f32.mrf.mxu0
      %v1129 = vadd.f32 %v1080, %v1128
      %1130 = vmatmul.bf16.gmra.mxu0 %v353
      %v1131 = vpop.f32.mrf.mxu0
      %v1132 = vadd.f32 %v1083, %v1131
      %v1133 = vpop.f32.mrf.mxu0
      %v1134 = vadd.f32 %v1085, %v1133
      %1135 = vmatmul.bf16.gmra.mxu0 %v360
      %v1136 = vpop.f32.mrf.mxu0
      %v1137 = vadd.f32 %v1088, %v1136
      %v1138 = vpop.f32.mrf.mxu0
      %v1139 = vadd.f32 %v1090, %v1138
      %1140 = vmatmul.bf16.gmra.mxu0 %v367
      %v1141 = vpop.f32.mrf.mxu0
      %v1142 = vadd.f32 %v1093, %v1141
      %v1143 = vpop.f32.mrf.mxu0
      %v1144 = vadd.f32 %v1095, %v1143
      %1145 = vmatmul.bf16.gmra.mxu0 %v374
      %v1146 = vpop.f32.mrf.mxu0
      %v1147 = vadd.f32 %v1098, %v1146
      %v1148 = vpop.f32.mrf.mxu0
      %v1149 = vadd.f32 %v1100, %v1148
      %1150 = vmatmul.bf16.gmra.mxu0 %v381
      %v1151 = vpop.f32.mrf.mxu0
      %v1152 = vadd.f32 %v1103, %v1151
      %v1153 = vpop.f32.mrf.mxu0
      %v1154 = vadd.f32 %v1105, %v1153
      %1155 = vmatmul.bf16.gmra.mxu0 %v388
      %v1156 = vpop.f32.mrf.mxu0
      %v1157 = vadd.f32 %v1108, %v1156
      %v1158 = vpop.f32.mrf.mxu0
      %v1159 = vadd.f32 %v1110, %v1158
      %1160 = vmatmul.bf16.gmra.mxu0 %v395
      %v1161 = vpop.f32.mrf.mxu0
      %v1162 = vadd.f32 %v1113, %v1161
      %v1163 = vpop.f32.mrf.mxu0
      %v1164 = vadd.f32 %v1115, %v1163
      %1165 = vdwg.mxu0
      %1166 = vmatpush.bf16.msra.mxu0 %v860
      %1167 = vmatpush.bf16.msra.mxu0 %v858
      %1168 = vmatpush.bf16.msra.mxu0 %v856
      %1169 = vmatpush.bf16.msra.mxu0 %v854
      %1170 = vmatpush.bf16.msra.mxu0 %v852
      %1171 = vmatpush.bf16.msra.mxu0 %v850
      %1172 = vmatpush.bf16.msra.mxu0 %v848
      %1173 = vmatpush.bf16.msra.mxu0 %v846
      %1174 = vmatmul.bf16.gmra.mxu0 %v347
      %v1175 = vpop.f32.mrf.mxu0
      %v1176 = vadd.f32 %v1127, %v1175
      %v1177 = vpop.f32.mrf.mxu0
      %v1178 = vadd.f32 %v1129, %v1177
      %1179 = vmatmul.bf16.gmra.mxu0 %v354
      %v1180 = vpop.f32.mrf.mxu0
      %v1181 = vadd.f32 %v1132, %v1180
      %v1182 = vpop.f32.mrf.mxu0
      %v1183 = vadd.f32 %v1134, %v1182
      %1184 = vmatmul.bf16.gmra.mxu0 %v361
      %v1185 = vpop.f32.mrf.mxu0
      %v1186 = vadd.f32 %v1137, %v1185
      %v1187 = vpop.f32.mrf.mxu0
      %v1188 = vadd.f32 %v1139, %v1187
      %1189 = vmatmul.bf16.gmra.mxu0 %v368
      %v1190 = vpop.f32.mrf.mxu0
      %v1191 = vadd.f32 %v1142, %v1190
      %v1192 = vpop.f32.mrf.mxu0
      %v1193 = vadd.f32 %v1144, %v1192
      %1194 = vmatmul.bf16.gmra.mxu0 %v375
      %v1195 = vpop.f32.mrf.mxu0
      %v1196 = vadd.f32 %v1147, %v1195
      %v1197 = vpop.f32.mrf.mxu0
      %v1198 = vadd.f32 %v1149, %v1197
      %1199 = vmatmul.bf16.gmra.mxu0 %v382
      %v1200 = vpop.f32.mrf.mxu0
      %v1201 = vadd.f32 %v1152, %v1200
      %v1202 = vpop.f32.mrf.mxu0
      %v1203 = vadd.f32 %v1154, %v1202
      %1204 = vmatmul.bf16.gmra.mxu0 %v389
      %v1205 = vpop.f32.mrf.mxu0
      %v1206 = vadd.f32 %v1157, %v1205
      %v1207 = vpop.f32.mrf.mxu0
      %v1208 = vadd.f32 %v1159, %v1207
      %1209 = vmatmul.bf16.gmra.mxu0 %v396
      %v1210 = vpop.f32.mrf.mxu0
      %v1211 = vadd.f32 %v1162, %v1210
      %v1212 = vpop.f32.mrf.mxu0
      %v1213 = vadd.f32 %v1164, %v1212
      %1214 = vdwg.mxu0
      %1215 = vmatpush.bf16.msra.mxu0 %v876
      %1216 = vmatpush.bf16.msra.mxu0 %v874
      %1217 = vmatpush.bf16.msra.mxu0 %v872
      %1218 = vmatpush.bf16.msra.mxu0 %v870
      %1219 = vmatpush.bf16.msra.mxu0 %v868
      %1220 = vmatpush.bf16.msra.mxu0 %v866
      %1221 = vmatpush.bf16.msra.mxu0 %v864
      %1222 = vmatpush.bf16.msra.mxu0 %v862
      %1223 = vmatmul.bf16.gmra.mxu0 %v348
      %v1224 = vpop.f32.mrf.mxu0
      %v1225 = vadd.f32 %v1176, %v1224
      %v1226 = vpop.f32.mrf.mxu0
      %v1227 = vadd.f32 %v1178, %v1226
      %1228 = vmatmul.bf16.gmra.mxu0 %v355
      %v1229 = vpop.f32.mrf.mxu0
      %v1230 = vadd.f32 %v1181, %v1229
      %v1231 = vpop.f32.mrf.mxu0
      %v1232 = vadd.f32 %v1183, %v1231
      %1233 = vmatmul.bf16.gmra.mxu0 %v362
      %v1234 = vpop.f32.mrf.mxu0
      %v1235 = vadd.f32 %v1186, %v1234
      %v1236 = vpop.f32.mrf.mxu0
      %v1237 = vadd.f32 %v1188, %v1236
      %1238 = vmatmul.bf16.gmra.mxu0 %v369
      %v1239 = vpop.f32.mrf.mxu0
      %v1240 = vadd.f32 %v1191, %v1239
      %v1241 = vpop.f32.mrf.mxu0
      %v1242 = vadd.f32 %v1193, %v1241
      %1243 = vmatmul.bf16.gmra.mxu0 %v376
      %v1244 = vpop.f32.mrf.mxu0
      %v1245 = vadd.f32 %v1196, %v1244
      %v1246 = vpop.f32.mrf.mxu0
      %v1247 = vadd.f32 %v1198, %v1246
      %1248 = vmatmul.bf16.gmra.mxu0 %v383
      %v1249 = vpop.f32.mrf.mxu0
      %v1250 = vadd.f32 %v1201, %v1249
      %v1251 = vpop.f32.mrf.mxu0
      %v1252 = vadd.f32 %v1203, %v1251
      %1253 = vmatmul.bf16.gmra.mxu0 %v390
      %v1254 = vpop.f32.mrf.mxu0
      %v1255 = vadd.f32 %v1206, %v1254
      %v1256 = vpop.f32.mrf.mxu0
      %v1257 = vadd.f32 %v1208, %v1256
      %1258 = vmatmul.bf16.gmra.mxu0 %v397
      %v1259 = vpop.f32.mrf.mxu0
      %v1260 = vadd.f32 %v1211, %v1259
      %v1261 = vpop.f32.mrf.mxu0
      %v1262 = vadd.f32 %v1213, %v1261
      %1263 = vdwg.mxu0
      %1264 = vmatpush.bf16.msra.mxu0 %v892
      %1265 = vmatpush.bf16.msra.mxu0 %v890
      %1266 = vmatpush.bf16.msra.mxu0 %v888
      %1267 = vmatpush.bf16.msra.mxu0 %v886
      %1268 = vmatpush.bf16.msra.mxu0 %v884
      %1269 = vmatpush.bf16.msra.mxu0 %v882
      %1270 = vmatpush.bf16.msra.mxu0 %v880
      %1271 = vmatpush.bf16.msra.mxu0 %v878
      %1272 = vmatmul.bf16.gmra.mxu0 %v349
      %v1273 = vpop.f32.mrf.mxu0
      %v1274 = vadd.f32 %v1225, %v1273
      %v1275 = vpop.f32.mrf.mxu0
      %v1276 = vadd.f32 %v1227, %v1275
      %1277 = vmatmul.bf16.gmra.mxu0 %v356
      %v1278 = vpop.f32.mrf.mxu0
      %v1279 = vadd.f32 %v1230, %v1278
      %v1280 = vpop.f32.mrf.mxu0
      %v1281 = vadd.f32 %v1232, %v1280
      %1282 = vmatmul.bf16.gmra.mxu0 %v363
      %v1283 = vpop.f32.mrf.mxu0
      %v1284 = vadd.f32 %v1235, %v1283
      %v1285 = vpop.f32.mrf.mxu0
      %v1286 = vadd.f32 %v1237, %v1285
      %1287 = vmatmul.bf16.gmra.mxu0 %v370
      %v1288 = vpop.f32.mrf.mxu0
      %v1289 = vadd.f32 %v1240, %v1288
      %v1290 = vpop.f32.mrf.mxu0
      %v1291 = vadd.f32 %v1242, %v1290
      %1292 = vmatmul.bf16.gmra.mxu0 %v377
      %v1293 = vpop.f32.mrf.mxu0
      %v1294 = vadd.f32 %v1245, %v1293
      %v1295 = vpop.f32.mrf.mxu0
      %v1296 = vadd.f32 %v1247, %v1295
      %1297 = vmatmul.bf16.gmra.mxu0 %v384
      %v1298 = vpop.f32.mrf.mxu0
      %v1299 = vadd.f32 %v1250, %v1298
      %v1300 = vpop.f32.mrf.mxu0
      %v1301 = vadd.f32 %v1252, %v1300
      %1302 = vmatmul.bf16.gmra.mxu0 %v391
      %v1303 = vpop.f32.mrf.mxu0
      %v1304 = vadd.f32 %v1255, %v1303
      %v1305 = vpop.f32.mrf.mxu0
      %v1306 = vadd.f32 %v1257, %v1305
      %1307 = vmatmul.bf16.gmra.mxu0 %v398
      %v1308 = vpop.f32.mrf.mxu0
      %v1309 = vadd.f32 %v1260, %v1308
      %v1310 = vpop.f32.mrf.mxu0
      %v1311 = vadd.f32 %v1262, %v1310
      %1312 = vdwg.mxu0
      %1313 = vmatpush.bf16.msra.mxu0 0
      %1314 = vmatpush.bf16.msra.mxu0 0
      %1315 = vmatpush.bf16.msra.mxu0 0
      %1316 = vmatpush.bf16.msra.mxu0 0
      %1317 = vmatpush.bf16.msra.mxu0 0
      %1318 = vmatpush.bf16.msra.mxu0 0
      %1319 = vmatpush.bf16.msra.mxu0 0
      %1320 = vmatpush.bf16.msra.mxu0 %v894
      %1321 = vmatmul.bf16.gmra.mxu0 %v996
      %v1322 = vpop.f32.mrf.mxu0
      %v1323 = vadd.f32 %v1274, %v1322
      %v1324 = vpop.f32.mrf.mxu0
      %v1325 = vadd.f32 %v1276, %v1324
      %1326 = vmatmul.bf16.gmra.mxu0 %v999
      %v1327 = vpop.f32.mrf.mxu0
      %v1328 = vadd.f32 %v1279, %v1327
      %v1329 = vpop.f32.mrf.mxu0
      %v1330 = vadd.f32 %v1281, %v1329
      %1331 = vmatmul.bf16.gmra.mxu0 %v1002
      %v1332 = vpop.f32.mrf.mxu0
      %v1333 = vadd.f32 %v1284, %v1332
      %v1334 = vpop.f32.mrf.mxu0
      %v1335 = vadd.f32 %v1286, %v1334
      %1336 = vmatmul.bf16.gmra.mxu0 %v1005
      %v1337 = vpop.f32.mrf.mxu0
      %v1338 = vadd.f32 %v1289, %v1337
      %v1339 = vpop.f32.mrf.mxu0
      %v1340 = vadd.f32 %v1291, %v1339
      %1341 = vmatmul.bf16.gmra.mxu0 %v1008
      %v1342 = vpop.f32.mrf.mxu0
      %v1343 = vadd.f32 %v1294, %v1342
      %v1344 = vpop.f32.mrf.mxu0
      %v1345 = vadd.f32 %v1296, %v1344
      %1346 = vmatmul.bf16.gmra.mxu0 %v1011
      %v1347 = vpop.f32.mrf.mxu0
      %v1348 = vadd.f32 %v1299, %v1347
      %v1349 = vpop.f32.mrf.mxu0
      %v1350 = vadd.f32 %v1301, %v1349
      %1351 = vmatmul.bf16.gmra.mxu0 %v1014
      %v1352 = vpop.f32.mrf.mxu0
      %v1353 = vadd.f32 %v1304, %v1352
      %v1354 = vpop.f32.mrf.mxu0
      %v1355 = vadd.f32 %v1306, %v1354
      %1356 = vmatmul.bf16.gmra.mxu0 %v1017
      %v1357 = vpop.f32.mrf.mxu0
      %v1358 = vadd.f32 %v1309, %v1357
      %v1359 = vpop.f32.mrf.mxu0
      %v1360 = vadd.f32 %v1311, %v1359
      %1361 = vdwg.mxu0
      %1362 = vmatpush.bf16.msra.mxu0 %v813
      %1363 = vmatpush.bf16.msra.mxu0 %v811
      %1364 = vmatpush.bf16.msra.mxu0 %v809
      %1365 = vmatpush.bf16.msra.mxu0 %v807
      %1366 = vmatpush.bf16.msra.mxu0 %v805
      %1367 = vmatpush.bf16.msra.mxu0 %v803
      %1368 = vmatpush.bf16.msra.mxu0 %v801
      %1369 = vmatpush.bf16.msra.mxu0 %v799
      %1370 = vmatmul.bf16.gmra.mxu0 %v344
      %v1371 = vpop.f32.mrf.mxu0
      %v1372 = vadd.f32 %v501, %v1371
      %v1373 = vpop.f32.mrf.mxu0
      %v1374 = vadd.f32 %v501, %v1373
      %1375 = vmatmul.bf16.gmra.mxu0 %v351
      %v1376 = vpop.f32.mrf.mxu0
      %v1377 = vadd.f32 %v501, %v1376
      %v1378 = vpop.f32.mrf.mxu0
      %v1379 = vadd.f32 %v501, %v1378
      %1380 = vmatmul.bf16.gmra.mxu0 %v358
      %v1381 = vpop.f32.mrf.mxu0
      %v1382 = vadd.f32 %v501, %v1381
      %v1383 = vpop.f32.mrf.mxu0
      %v1384 = vadd.f32 %v501, %v1383
      %1385 = vmatmul.bf16.gmra.mxu0 %v365
      %v1386 = vpop.f32.mrf.mxu0
      %v1387 = vadd.f32 %v501, %v1386
      %v1388 = vpop.f32.mrf.mxu0
      %v1389 = vadd.f32 %v501, %v1388
      %1390 = vmatmul.bf16.gmra.mxu0 %v372
      %v1391 = vpop.f32.mrf.mxu0
      %v1392 = vadd.f32 %v501, %v1391
      %v1393 = vpop.f32.mrf.mxu0
      %v1394 = vadd.f32 %v501, %v1393
      %1395 = vmatmul.bf16.gmra.mxu0 %v379
      %v1396 = vpop.f32.mrf.mxu0
      %v1397 = vadd.f32 %v501, %v1396
      %v1398 = vpop.f32.mrf.mxu0
      %v1399 = vadd.f32 %v501, %v1398
      %1400 = vmatmul.bf16.gmra.mxu0 %v386
      %v1401 = vpop.f32.mrf.mxu0
      %v1402 = vadd.f32 %v501, %v1401
      %v1403 = vpop.f32.mrf.mxu0
      %v1404 = vadd.f32 %v501, %v1403
      %1405 = vmatmul.bf16.gmra.mxu0 %v393
      %v1406 = vpop.f32.mrf.mxu0
      %v1407 = vadd.f32 %v501, %v1406
      %v1408 = vpop.f32.mrf.mxu0
      %v1409 = vadd.f32 %v501, %v1408
      %1410 = vdwg.mxu0
      %1411 = vmatpush.bf16.msra.mxu0 %v829
      %1412 = vmatpush.bf16.msra.mxu0 %v827
      %1413 = vmatpush.bf16.msra.mxu0 %v825
      %1414 = vmatpush.bf16.msra.mxu0 %v823
      %1415 = vmatpush.bf16.msra.mxu0 %v821
      %1416 = vmatpush.bf16.msra.mxu0 %v819
      %1417 = vmatpush.bf16.msra.mxu0 %v817
      %1418 = vmatpush.bf16.msra.mxu0 %v815
      %1419 = vmatmul.bf16.gmra.mxu0 %v345
      %v1420 = vpop.f32.mrf.mxu0
      %v1421 = vadd.f32 %v1372, %v1420
      %v1422 = vpop.f32.mrf.mxu0
      %v1423 = vadd.f32 %v1374, %v1422
      %1424 = vmatmul.bf16.gmra.mxu0 %v352
      %v1425 = vpop.f32.mrf.mxu0
      %v1426 = vadd.f32 %v1377, %v1425
      %v1427 = vpop.f32.mrf.mxu0
      %v1428 = vadd.f32 %v1379, %v1427
      %1429 = vmatmul.bf16.gmra.mxu0 %v359
      %v1430 = vpop.f32.mrf.mxu0
      %v1431 = vadd.f32 %v1382, %v1430
      %v1432 = vpop.f32.mrf.mxu0
      %v1433 = vadd.f32 %v1384, %v1432
      %1434 = vmatmul.bf16.gmra.mxu0 %v366
      %v1435 = vpop.f32.mrf.mxu0
      %v1436 = vadd.f32 %v1387, %v1435
      %v1437 = vpop.f32.mrf.mxu0
      %v1438 = vadd.f32 %v1389, %v1437
      %1439 = vmatmul.bf16.gmra.mxu0 %v373
      %v1440 = vpop.f32.mrf.mxu0
      %v1441 = vadd.f32 %v1392, %v1440
      %v1442 = vpop.f32.mrf.mxu0
      %v1443 = vadd.f32 %v1394, %v1442
      %1444 = vmatmul.bf16.gmra.mxu0 %v380
      %v1445 = vpop.f32.mrf.mxu0
      %v1446 = vadd.f32 %v1397, %v1445
      %v1447 = vpop.f32.mrf.mxu0
      %v1448 = vadd.f32 %v1399, %v1447
      %1449 = vmatmul.bf16.gmra.mxu0 %v387
      %v1450 = vpop.f32.mrf.mxu0
      %v1451 = vadd.f32 %v1402, %v1450
      %v1452 = vpop.f32.mrf.mxu0
      %v1453 = vadd.f32 %v1404, %v1452
      %1454 = vmatmul.bf16.gmra.mxu0 %v394
      %v1455 = vpop.f32.mrf.mxu0
      %v1456 = vadd.f32 %v1407, %v1455
      %v1457 = vpop.f32.mrf.mxu0
      %v1458 = vadd.f32 %v1409, %v1457
      %1459 = vdwg.mxu0
      %1460 = vmatpush.bf16.msra.mxu0 %v845
      %1461 = vmatpush.bf16.msra.mxu0 %v843
      %1462 = vmatpush.bf16.msra.mxu0 %v841
      %1463 = vmatpush.bf16.msra.mxu0 %v839
      %1464 = vmatpush.bf16.msra.mxu0 %v837
      %1465 = vmatpush.bf16.msra.mxu0 %v835
      %1466 = vmatpush.bf16.msra.mxu0 %v833
      %1467 = vmatpush.bf16.msra.mxu0 %v831
      %1468 = vmatmul.bf16.gmra.mxu0 %v346
      %v1469 = vpop.f32.mrf.mxu0
      %v1470 = vadd.f32 %v1421, %v1469
      %v1471 = vpop.f32.mrf.mxu0
      %v1472 = vadd.f32 %v1423, %v1471
      %1473 = vmatmul.bf16.gmra.mxu0 %v353
      %v1474 = vpop.f32.mrf.mxu0
      %v1475 = vadd.f32 %v1426, %v1474
      %v1476 = vpop.f32.mrf.mxu0
      %v1477 = vadd.f32 %v1428, %v1476
      %1478 = vmatmul.bf16.gmra.mxu0 %v360
      %v1479 = vpop.f32.mrf.mxu0
      %v1480 = vadd.f32 %v1431, %v1479
      %v1481 = vpop.f32.mrf.mxu0
      %v1482 = vadd.f32 %v1433, %v1481
      %1483 = vmatmul.bf16.gmra.mxu0 %v367
      %v1484 = vpop.f32.mrf.mxu0
      %v1485 = vadd.f32 %v1436, %v1484
      %v1486 = vpop.f32.mrf.mxu0
      %v1487 = vadd.f32 %v1438, %v1486
      %1488 = vmatmul.bf16.gmra.mxu0 %v374
      %v1489 = vpop.f32.mrf.mxu0
      %v1490 = vadd.f32 %v1441, %v1489
      %v1491 = vpop.f32.mrf.mxu0
      %v1492 = vadd.f32 %v1443, %v1491
      %1493 = vmatmul.bf16.gmra.mxu0 %v381
      %v1494 = vpop.f32.mrf.mxu0
      %v1495 = vadd.f32 %v1446, %v1494
      %v1496 = vpop.f32.mrf.mxu0
      %v1497 = vadd.f32 %v1448, %v1496
      %1498 = vmatmul.bf16.gmra.mxu0 %v388
      %v1499 = vpop.f32.mrf.mxu0
      %v1500 = vadd.f32 %v1451, %v1499
      %v1501 = vpop.f32.mrf.mxu0
      %v1502 = vadd.f32 %v1453, %v1501
      %1503 = vmatmul.bf16.gmra.mxu0 %v395
      %v1504 = vpop.f32.mrf.mxu0
      %v1505 = vadd.f32 %v1456, %v1504
      %v1506 = vpop.f32.mrf.mxu0
      %v1507 = vadd.f32 %v1458, %v1506
      %1508 = vdwg.mxu0
      %1509 = vmatpush.bf16.msra.mxu0 %v861
      %1510 = vmatpush.bf16.msra.mxu0 %v859
      %1511 = vmatpush.bf16.msra.mxu0 %v857
      %1512 = vmatpush.bf16.msra.mxu0 %v855
      %1513 = vmatpush.bf16.msra.mxu0 %v853
      %1514 = vmatpush.bf16.msra.mxu0 %v851
      %1515 = vmatpush.bf16.msra.mxu0 %v849
      %1516 = vmatpush.bf16.msra.mxu0 %v847
      %1517 = vmatmul.bf16.gmra.mxu0 %v347
      %v1518 = vpop.f32.mrf.mxu0
      %v1519 = vadd.f32 %v1470, %v1518
      %v1520 = vpop.f32.mrf.mxu0
      %v1521 = vadd.f32 %v1472, %v1520
      %1522 = vmatmul.bf16.gmra.mxu0 %v354
      %v1523 = vpop.f32.mrf.mxu0
      %v1524 = vadd.f32 %v1475, %v1523
      %v1525 = vpop.f32.mrf.mxu0
      %v1526 = vadd.f32 %v1477, %v1525
      %1527 = vmatmul.bf16.gmra.mxu0 %v361
      %v1528 = vpop.f32.mrf.mxu0
      %v1529 = vadd.f32 %v1480, %v1528
      %v1530 = vpop.f32.mrf.mxu0
      %v1531 = vadd.f32 %v1482, %v1530
      %1532 = vmatmul.bf16.gmra.mxu0 %v368
      %v1533 = vpop.f32.mrf.mxu0
      %v1534 = vadd.f32 %v1485, %v1533
      %v1535 = vpop.f32.mrf.mxu0
      %v1536 = vadd.f32 %v1487, %v1535
      %1537 = vmatmul.bf16.gmra.mxu0 %v375
      %v1538 = vpop.f32.mrf.mxu0
      %v1539 = vadd.f32 %v1490, %v1538
      %v1540 = vpop.f32.mrf.mxu0
      %v1541 = vadd.f32 %v1492, %v1540
      %1542 = vmatmul.bf16.gmra.mxu0 %v382
      %v1543 = vpop.f32.mrf.mxu0
      %v1544 = vadd.f32 %v1495, %v1543
      %v1545 = vpop.f32.mrf.mxu0
      %v1546 = vadd.f32 %v1497, %v1545
      %1547 = vmatmul.bf16.gmra.mxu0 %v389
      %v1548 = vpop.f32.mrf.mxu0
      %v1549 = vadd.f32 %v1500, %v1548
      %v1550 = vpop.f32.mrf.mxu0
      %v1551 = vadd.f32 %v1502, %v1550
      %1552 = vmatmul.bf16.gmra.mxu0 %v396
      %v1553 = vpop.f32.mrf.mxu0
      %v1554 = vadd.f32 %v1505, %v1553
      %v1555 = vpop.f32.mrf.mxu0
      %v1556 = vadd.f32 %v1507, %v1555
      %1557 = vdwg.mxu0
      %1558 = vmatpush.bf16.msra.mxu0 %v877
      %1559 = vmatpush.bf16.msra.mxu0 %v875
      %1560 = vmatpush.bf16.msra.mxu0 %v873
      %1561 = vmatpush.bf16.msra.mxu0 %v871
      %1562 = vmatpush.bf16.msra.mxu0 %v869
      %1563 = vmatpush.bf16.msra.mxu0 %v867
      %1564 = vmatpush.bf16.msra.mxu0 %v865
      %1565 = vmatpush.bf16.msra.mxu0 %v863
      %1566 = vmatmul.bf16.gmra.mxu0 %v348
      %v1567 = vpop.f32.mrf.mxu0
      %v1568 = vadd.f32 %v1519, %v1567
      %v1569 = vpop.f32.mrf.mxu0
      %v1570 = vadd.f32 %v1521, %v1569
      %1571 = vmatmul.bf16.gmra.mxu0 %v355
      %v1572 = vpop.f32.mrf.mxu0
      %v1573 = vadd.f32 %v1524, %v1572
      %v1574 = vpop.f32.mrf.mxu0
      %v1575 = vadd.f32 %v1526, %v1574
      %1576 = vmatmul.bf16.gmra.mxu0 %v362
      %v1577 = vpop.f32.mrf.mxu0
      %v1578 = vadd.f32 %v1529, %v1577
      %v1579 = vpop.f32.mrf.mxu0
      %v1580 = vadd.f32 %v1531, %v1579
      %1581 = vmatmul.bf16.gmra.mxu0 %v369
      %v1582 = vpop.f32.mrf.mxu0
      %v1583 = vadd.f32 %v1534, %v1582
      %v1584 = vpop.f32.mrf.mxu0
      %v1585 = vadd.f32 %v1536, %v1584
      %1586 = vmatmul.bf16.gmra.mxu0 %v376
      %v1587 = vpop.f32.mrf.mxu0
      %v1588 = vadd.f32 %v1539, %v1587
      %v1589 = vpop.f32.mrf.mxu0
      %v1590 = vadd.f32 %v1541, %v1589
      %1591 = vmatmul.bf16.gmra.mxu0 %v383
      %v1592 = vpop.f32.mrf.mxu0
      %v1593 = vadd.f32 %v1544, %v1592
      %v1594 = vpop.f32.mrf.mxu0
      %v1595 = vadd.f32 %v1546, %v1594
      %1596 = vmatmul.bf16.gmra.mxu0 %v390
      %v1597 = vpop.f32.mrf.mxu0
      %v1598 = vadd.f32 %v1549, %v1597
      %v1599 = vpop.f32.mrf.mxu0
      %v1600 = vadd.f32 %v1551, %v1599
      %1601 = vmatmul.bf16.gmra.mxu0 %v397
      %v1602 = vpop.f32.mrf.mxu0
      %v1603 = vadd.f32 %v1554, %v1602
      %v1604 = vpop.f32.mrf.mxu0
      %v1605 = vadd.f32 %v1556, %v1604
      %1606 = vdwg.mxu0
      %1607 = vmatpush.bf16.msra.mxu0 %v893
      %1608 = vmatpush.bf16.msra.mxu0 %v891
      %1609 = vmatpush.bf16.msra.mxu0 %v889
      %1610 = vmatpush.bf16.msra.mxu0 %v887
      %1611 = vmatpush.bf16.msra.mxu0 %v885
      %1612 = vmatpush.bf16.msra.mxu0 %v883
      %1613 = vmatpush.bf16.msra.mxu0 %v881
      %1614 = vmatpush.bf16.msra.mxu0 %v879
      %1615 = vmatmul.bf16.gmra.mxu0 %v349
      %v1616 = vpop.f32.mrf.mxu0
      %v1617 = vadd.f32 %v1568, %v1616
      %v1618 = vpop.f32.mrf.mxu0
      %v1619 = vadd.f32 %v1570, %v1618
      %1620 = vmatmul.bf16.gmra.mxu0 %v356
      %v1621 = vpop.f32.mrf.mxu0
      %v1622 = vadd.f32 %v1573, %v1621
      %v1623 = vpop.f32.mrf.mxu0
      %v1624 = vadd.f32 %v1575, %v1623
      %1625 = vmatmul.bf16.gmra.mxu0 %v363
      %v1626 = vpop.f32.mrf.mxu0
      %v1627 = vadd.f32 %v1578, %v1626
      %v1628 = vpop.f32.mrf.mxu0
      %v1629 = vadd.f32 %v1580, %v1628
      %1630 = vmatmul.bf16.gmra.mxu0 %v370
      %v1631 = vpop.f32.mrf.mxu0
      %v1632 = vadd.f32 %v1583, %v1631
      %v1633 = vpop.f32.mrf.mxu0
      %v1634 = vadd.f32 %v1585, %v1633
      %1635 = vmatmul.bf16.gmra.mxu0 %v377
      %v1636 = vpop.f32.mrf.mxu0
      %v1637 = vadd.f32 %v1588, %v1636
      %v1638 = vpop.f32.mrf.mxu0
      %v1639 = vadd.f32 %v1590, %v1638
      %1640 = vmatmul.bf16.gmra.mxu0 %v384
      %v1641 = vpop.f32.mrf.mxu0
      %v1642 = vadd.f32 %v1593, %v1641
      %v1643 = vpop.f32.mrf.mxu0
      %v1644 = vadd.f32 %v1595, %v1643
      %1645 = vmatmul.bf16.gmra.mxu0 %v391
      %v1646 = vpop.f32.mrf.mxu0
      %v1647 = vadd.f32 %v1598, %v1646
      %v1648 = vpop.f32.mrf.mxu0
      %v1649 = vadd.f32 %v1600, %v1648
      %1650 = vmatmul.bf16.gmra.mxu0 %v398
      %v1651 = vpop.f32.mrf.mxu0
      %v1652 = vadd.f32 %v1603, %v1651
      %v1653 = vpop.f32.mrf.mxu0
      %v1654 = vadd.f32 %v1605, %v1653
      %1655 = vdwg.mxu0
      %1656 = vmatpush.bf16.msra.mxu0 0
      %1657 = vmatpush.bf16.msra.mxu0 0
      %1658 = vmatpush.bf16.msra.mxu0 0
      %1659 = vmatpush.bf16.msra.mxu0 0
      %1660 = vmatpush.bf16.msra.mxu0 0
      %1661 = vmatpush.bf16.msra.mxu0 0
      %1662 = vmatpush.bf16.msra.mxu0 0
      %1663 = vmatpush.bf16.msra.mxu0 %v895
      %1664 = vmatmul.bf16.gmra.mxu0 %v996
      %v1665 = vpop.f32.mrf.mxu0
      %v1666 = vadd.f32 %v1617, %v1665
      %v1667 = vpop.f32.mrf.mxu0
      %v1668 = vadd.f32 %v1619, %v1667
      %1669 = vmatmul.bf16.gmra.mxu0 %v999
      %v1670 = vpop.f32.mrf.mxu0
      %v1671 = vadd.f32 %v1622, %v1670
      %v1672 = vpop.f32.mrf.mxu0
      %v1673 = vadd.f32 %v1624, %v1672
      %1674 = vmatmul.bf16.gmra.mxu0 %v1002
      %v1675 = vpop.f32.mrf.mxu0
      %v1676 = vadd.f32 %v1627, %v1675
      %v1677 = vpop.f32.mrf.mxu0
      %v1678 = vadd.f32 %v1629, %v1677
      %1679 = vmatmul.bf16.gmra.mxu0 %v1005
      %v1680 = vpop.f32.mrf.mxu0
      %v1681 = vadd.f32 %v1632, %v1680
      %v1682 = vpop.f32.mrf.mxu0
      %v1683 = vadd.f32 %v1634, %v1682
      %1684 = vmatmul.bf16.gmra.mxu0 %v1008
      %v1685 = vpop.f32.mrf.mxu0
      %v1686 = vadd.f32 %v1637, %v1685
      %v1687 = vpop.f32.mrf.mxu0
      %v1688 = vadd.f32 %v1639, %v1687
      %1689 = vmatmul.bf16.gmra.mxu0 %v1011
      %v1690 = vpop.f32.mrf.mxu0
      %v1691 = vadd.f32 %v1642, %v1690
      %v1692 = vpop.f32.mrf.mxu0
      %v1693 = vadd.f32 %v1644, %v1692
      %1694 = vmatmul.bf16.gmra.mxu0 %v1014
      %v1695 = vpop.f32.mrf.mxu0
      %v1696 = vadd.f32 %v1647, %v1695
      %v1697 = vpop.f32.mrf.mxu0
      %v1698 = vadd.f32 %v1649, %v1697
      %1699 = vmatmul.bf16.gmra.mxu0 %v1017
      %v1700 = vpop.f32.mrf.mxu0
      %v1701 = vadd.f32 %v1652, %v1700
      %v1702 = vpop.f32.mrf.mxu0
      %v1703 = vadd.f32 %v1654, %v1702
      %1704 = vdwg.mxu0
      %v1705 = vmax.f32 %v1323, 0.0
      %v1706 = vmax.f32 %v1666, 0.0
      %v1707 = vmax.f32 %v1325, 0.0
      %v1708 = vmax.f32 %v1668, 0.0
      %v1709 = vmax.f32 %v1328, 0.0
      %v1710 = vmax.f32 %v1671, 0.0
      %v1711 = vmax.f32 %v1330, 0.0
      %v1712 = vmax.f32 %v1673, 0.0
      %v1713 = vmax.f32 %v1333, 0.0
      %v1714 = vmax.f32 %v1676, 0.0
      %v1715 = vmax.f32 %v1335, 0.0
      %v1716 = vmax.f32 %v1678, 0.0
      %v1717 = vmax.f32 %v1338, 0.0
      %v1718 = vmax.f32 %v1681, 0.0
      %v1719 = vmax.f32 %v1340, 0.0
      %v1720 = vmax.f32 %v1683, 0.0
      %v1721 = vmax.f32 %v1343, 0.0
      %v1722 = vmax.f32 %v1686, 0.0
      %v1723 = vmax.f32 %v1345, 0.0
      %v1724 = vmax.f32 %v1688, 0.0
      %v1725 = vmax.f32 %v1348, 0.0
      %v1726 = vmax.f32 %v1691, 0.0
      %v1727 = vmax.f32 %v1350, 0.0
      %v1728 = vmax.f32 %v1693, 0.0
      %v1729 = vmax.f32 %v1353, 0.0
      %v1730 = vmax.f32 %v1696, 0.0
      %v1731 = vmax.f32 %v1355, 0.0
      %v1732 = vmax.f32 %v1698, 0.0
      %v1733 = vmax.f32 %v1358, 0.0
      %v1734 = vmax.f32 %v1701, 0.0
      %v1735 = vmax.f32 %v1360, 0.0
      %v1736 = vmax.f32 %v1703, 0.0
      %v1737 = vpack.c.bf16 %v1707, %v1705
      %v1738 = vpack.c.bf16 %v1708, %v1706
      %v1739 = vpack.c.bf16 %v1711, %v1709
      %v1740 = vpack.c.bf16 %v1712, %v1710
      %v1741 = vpack.c.bf16 %v1715, %v1713
      %v1742 = vpack.c.bf16 %v1716, %v1714
      %v1743 = vpack.c.bf16 %v1719, %v1717
      %v1744 = vpack.c.bf16 %v1720, %v1718
      %v1745 = vpack.c.bf16 %v1723, %v1721
      %v1746 = vpack.c.bf16 %v1724, %v1722
      %v1747 = vpack.c.bf16 %v1727, %v1725
      %v1748 = vpack.c.bf16 %v1728, %v1726
      %v1749 = vpack.c.bf16 %v1731, %v1729
      %v1750 = vpack.c.bf16 %v1732, %v1730
      %v1751 = vpack.c.bf16 %v1735, %v1733
      %v1752 = vpack.c.bf16 %v1736, %v1734
      %v1753 = vld [vmem:[%s3] sm:$0xf]
      %v1754 = vld [vmem:[%s3 + $0x4] sm:$0xf]
      %v1755 = vld [vmem:[%s3 + $0x8] sm:$0xf]
      %v1756 = vld [vmem:[%s3 + $0xc] sm:$0xf]
      %v1757 = vld [vmem:[%s3 + $0x10] sm:$0xf]
      %v1758 = vld [vmem:[%s3 + $0x14] sm:$0xf]
      %v1759 = vld [vmem:[%s3 + $0x18] sm:$0xf]
      %v1760 = vld [vmem:[%s3 + $0x1c] sm:$0xf]
      %v1761 = vld [vmem:[%s3 + $0x20] sm:$0xf]
      %v1762 = vld [vmem:[%s3 + $0x24] sm:$0xf]
      %v1763 = vld [vmem:[%s3 + $0x28] sm:$0xf]
      %v1764 = vld [vmem:[%s3 + $0x2c] sm:$0xf]
      %v1765 = vld [vmem:[%s3 + $0x30] sm:$0xf]
      %v1766 = vld [vmem:[%s3 + $0x34] sm:$0xf]
      %v1767 = vld [vmem:[%s3 + $0x38] sm:$0xf]
      %v1768 = vld [vmem:[%s3 + $0x3c] sm:$0xf]
      %v1769 = vld [vmem:[%s3 + $0x40] sm:$0xf]
      %v1770 = vld [vmem:[%s3 + $0x44] sm:$0xf]
      %v1771 = vld [vmem:[%s3 + $0x48] sm:$0xf]
      %v1772 = vld [vmem:[%s3 + $0x4c] sm:$0xf]
      %v1773 = vld [vmem:[%s3 + $0x50] sm:$0xf]
      %v1774 = vld [vmem:[%s3 + $0x54] sm:$0xf]
      %v1775 = vld [vmem:[%s3 + $0x58] sm:$0xf]
      %v1776 = vld [vmem:[%s3 + $0x5c] sm:$0xf]
      %v1777 = vld [vmem:[%s3 + $0x60] sm:$0xf]
      %v1778 = vld [vmem:[%s3 + $0x64] sm:$0xf]
      %v1779 = vld [vmem:[%s3 + $0x68] sm:$0xf]
      %v1780 = vld [vmem:[%s3 + $0x6c] sm:$0xf]
      %v1781 = vld [vmem:[%s3 + $0x70] sm:$0xf]
      %v1782 = vld [vmem:[%s3 + $0x74] sm:$0xf]
      %v1783 = vld [vmem:[%s3 + $0x78] sm:$0xf]
      %v1784 = vld [vmem:[%s3 + $0x7c] sm:$0xf]
      %v1785 = vld [vmem:[%s4] sm:$0x1]
      %v1787 = vperm.slane %v1785, 0
      %v1821 = vunpack.c.l.b16 %v1753
      %v1822 = vunpack.c.l.b16 %v1754
      %v1823 = vunpack.c.l.b16 %v1755
      %v1824 = vunpack.c.l.b16 %v1756
      %v1825 = vunpack.c.l.b16 %v1757
      %v1826 = vunpack.c.l.b16 %v1758
      %v1827 = vunpack.c.l.b16 %v1759
      %v1828 = vunpack.c.l.b16 %v1760
      %v1829 = vunpack.c.l.b16 %v1761
      %v1830 = vunpack.c.l.b16 %v1762
      %v1831 = vunpack.c.l.b16 %v1763
      %v1832 = vunpack.c.l.b16 %v1764
      %v1833 = vunpack.c.l.b16 %v1765
      %v1834 = vunpack.c.l.b16 %v1766
      %v1835 = vunpack.c.l.b16 %v1767
      %v1836 = vunpack.c.l.b16 %v1768
      %v1837 = vunpack.c.l.b16 %v1769
      %v1838 = vunpack.c.l.b16 %v1770
      %v1839 = vunpack.c.l.b16 %v1771
      %v1840 = vunpack.c.l.b16 %v1772
      %v1841 = vunpack.c.l.b16 %v1773
      %v1842 = vunpack.c.l.b16 %v1774
      %v1843 = vunpack.c.l.b16 %v1775
      %v1844 = vunpack.c.l.b16 %v1776
      %v1845 = vunpack.c.l.b16 %v1777
      %v1846 = vunpack.c.l.b16 %v1778
      %v1847 = vunpack.c.l.b16 %v1779
      %v1848 = vunpack.c.l.b16 %v1780
      %v1849 = vunpack.c.l.b16 %v1781
      %v1850 = vunpack.c.l.b16 %v1782
      %v1851 = vunpack.c.l.b16 %v1783
      %v1852 = vunpack.c.l.b16 %v1784
      %v1853 = vpack.c.b16 %v1822, %v1821
      %v1854 = vpack.c.b16 %v1824, %v1823
      %v1855 = vpack.c.b16 %v1826, %v1825
      %v1856 = vpack.c.b16 %v1828, %v1827
      %v1857 = vpack.c.b16 %v1830, %v1829
      %v1858 = vpack.c.b16 %v1832, %v1831
      %v1859 = vpack.c.b16 %v1834, %v1833
      %v1860 = vpack.c.b16 %v1836, %v1835
      %v1861 = vpack.c.b16 %v1838, %v1837
      %v1862 = vpack.c.b16 %v1840, %v1839
      %v1863 = vpack.c.b16 %v1842, %v1841
      %v1864 = vpack.c.b16 %v1844, %v1843
      %v1865 = vpack.c.b16 %v1846, %v1845
      %v1866 = vpack.c.b16 %v1848, %v1847
      %v1867 = vpack.c.b16 %v1850, %v1849
      %v1868 = vpack.c.b16 %v1852, %v1851
      %1885 = vmatpush.bf16.msra.mxu0 %v1860
      %1886 = vmatpush.bf16.msra.mxu0 %v1859
      %1887 = vmatpush.bf16.msra.mxu0 %v1858
      %1888 = vmatpush.bf16.msra.mxu0 %v1857
      %1889 = vmatpush.bf16.msra.mxu0 %v1856
      %1890 = vmatpush.bf16.msra.mxu0 %v1855
      %1891 = vmatpush.bf16.msra.mxu0 %v1854
      %1892 = vmatpush.bf16.msra.mxu0 %v1853
      %1893 = vmatmul.bf16.gmra.mxu0 %v1737
      %v1894 = vpop.f32.mrf.mxu0
      %v1895 = vadd.f32 %v1787, %v1894
      %v1896 = vpop.f32.mrf.mxu0
      %v1897 = vadd.f32 %v1787, %v1896
      %1898 = vmatmul.bf16.gmra.mxu0 %v1739
      %v1899 = vpop.f32.mrf.mxu0
      %v1900 = vadd.f32 %v1787, %v1899
      %v1901 = vpop.f32.mrf.mxu0
      %v1902 = vadd.f32 %v1787, %v1901
      %1903 = vmatmul.bf16.gmra.mxu0 %v1741
      %v1904 = vpop.f32.mrf.mxu0
      %v1905 = vadd.f32 %v1787, %v1904
      %v1906 = vpop.f32.mrf.mxu0
      %v1907 = vadd.f32 %v1787, %v1906
      %1908 = vmatmul.bf16.gmra.mxu0 %v1743
      %v1909 = vpop.f32.mrf.mxu0
      %v1910 = vadd.f32 %v1787, %v1909
      %v1911 = vpop.f32.mrf.mxu0
      %v1912 = vadd.f32 %v1787, %v1911
      %1913 = vmatmul.bf16.gmra.mxu0 %v1745
      %v1914 = vpop.f32.mrf.mxu0
      %v1915 = vadd.f32 %v1787, %v1914
      %v1916 = vpop.f32.mrf.mxu0
      %v1917 = vadd.f32 %v1787, %v1916
      %1918 = vmatmul.bf16.gmra.mxu0 %v1747
      %v1919 = vpop.f32.mrf.mxu0
      %v1920 = vadd.f32 %v1787, %v1919
      %v1921 = vpop.f32.mrf.mxu0
      %v1922 = vadd.f32 %v1787, %v1921
      %1923 = vmatmul.bf16.gmra.mxu0 %v1749
      %v1924 = vpop.f32.mrf.mxu0
      %v1925 = vadd.f32 %v1787, %v1924
      %v1926 = vpop.f32.mrf.mxu0
      %v1927 = vadd.f32 %v1787, %v1926
      %1928 = vmatmul.bf16.gmra.mxu0 %v1751
      %v1929 = vpop.f32.mrf.mxu0
      %v1930 = vadd.f32 %v1787, %v1929
      %v1931 = vpop.f32.mrf.mxu0
      %v1932 = vadd.f32 %v1787, %v1931
      %1933 = vdwg.mxu0
      %1934 = vmatpush.bf16.msra.mxu0 %v1868
      %1935 = vmatpush.bf16.msra.mxu0 %v1867
      %1936 = vmatpush.bf16.msra.mxu0 %v1866
      %1937 = vmatpush.bf16.msra.mxu0 %v1865
      %1938 = vmatpush.bf16.msra.mxu0 %v1864
      %1939 = vmatpush.bf16.msra.mxu0 %v1863
      %1940 = vmatpush.bf16.msra.mxu0 %v1862
      %1941 = vmatpush.bf16.msra.mxu0 %v1861
      %1942 = vmatmul.bf16.gmra.mxu0 %v1738
      %v1943 = vpop.f32.mrf.mxu0
      %v1944 = vadd.f32 %v1895, %v1943
      %v1945 = vpop.f32.mrf.mxu0
      %v1946 = vadd.f32 %v1897, %v1945
      %1947 = vmatmul.bf16.gmra.mxu0 %v1740
      %v1948 = vpop.f32.mrf.mxu0
      %v1949 = vadd.f32 %v1900, %v1948
      %v1950 = vpop.f32.mrf.mxu0
      %v1951 = vadd.f32 %v1902, %v1950
      %1952 = vmatmul.bf16.gmra.mxu0 %v1742
      %v1953 = vpop.f32.mrf.mxu0
      %v1954 = vadd.f32 %v1905, %v1953
      %v1955 = vpop.f32.mrf.mxu0
      %v1956 = vadd.f32 %v1907, %v1955
      %1957 = vmatmul.bf16.gmra.mxu0 %v1744
      %v1958 = vpop.f32.mrf.mxu0
      %v1959 = vadd.f32 %v1910, %v1958
      %v1960 = vpop.f32.mrf.mxu0
      %v1961 = vadd.f32 %v1912, %v1960
      %1962 = vmatmul.bf16.gmra.mxu0 %v1746
      %v1963 = vpop.f32.mrf.mxu0
      %v1964 = vadd.f32 %v1915, %v1963
      %v1965 = vpop.f32.mrf.mxu0
      %v1966 = vadd.f32 %v1917, %v1965
      %1967 = vmatmul.bf16.gmra.mxu0 %v1748
      %v1968 = vpop.f32.mrf.mxu0
      %v1969 = vadd.f32 %v1920, %v1968
      %v1970 = vpop.f32.mrf.mxu0
      %v1971 = vadd.f32 %v1922, %v1970
      %1972 = vmatmul.bf16.gmra.mxu0 %v1750
      %v1973 = vpop.f32.mrf.mxu0
      %v1974 = vadd.f32 %v1925, %v1973
      %v1975 = vpop.f32.mrf.mxu0
      %v1976 = vadd.f32 %v1927, %v1975
      %1977 = vmatmul.bf16.gmra.mxu0 %v1752
      %v1978 = vpop.f32.mrf.mxu0
      %v1979 = vadd.f32 %v1930, %v1978
      %v1980 = vpop.f32.mrf.mxu0
      %v1981 = vadd.f32 %v1932, %v1980
      %1982 = vdwg.mxu0
      %1983 = vst [vmem:[%s229] sm:$0xff] %v1944
      %1984 = vst [vmem:[%s229 + $0x8] sm:$0xff] %v1946
      %1985 = vst [vmem:[%s229 + $0x10] sm:$0xff] %v1949
      %1986 = vst [vmem:[%s229 + $0x18] sm:$0xff] %v1951
      %1987 = vst [vmem:[%s229 + $0x20] sm:$0xff] %v1954
      %1988 = vst [vmem:[%s229 + $0x28] sm:$0xff] %v1956
      %1989 = vst [vmem:[%s229 + $0x30] sm:$0xff] %v1959
      %1990 = vst [vmem:[%s229 + $0x38] sm:$0xff] %v1961
      %1991 = vst [vmem:[%s229 + $0x40] sm:$0xff] %v1964
      %1992 = vst [vmem:[%s229 + $0x48] sm:$0xff] %v1966
      %1993 = vst [vmem:[%s229 + $0x50] sm:$0xff] %v1969
      %1994 = vst [vmem:[%s229 + $0x58] sm:$0xff] %v1971
      %1995 = vst [vmem:[%s229 + $0x60] sm:$0xff] %v1974
      %1996 = vst [vmem:[%s229 + $0x68] sm:$0xff] %v1976
      %1997 = vst [vmem:[%s229 + $0x70] sm:$0xff] %v1979
      %1998 = vst [vmem:[%s229 + $0x78] sm:$0xff] %v1981
      %s1999 = smul.u32 16, %s16
      %p2000 = scmp.lt.s32.totalorder %s1999, 31
      %s2001 = scalar_select %p2000, %s1999, 31
      %s2002 = smul.addr %s2001, 8
      %s2003 = scalar_lea.vmem %s5, %s2002
      // Predicated region
      $region41: #{net_forward.1} parent=39 // pred_check
        %p2004 = pneg %p144
      $region42: #{net_forward.1} parent=39 // pred_check_branch
        %2006 = sbr.rel (%p2004) target = $region44
      $region43: #{net_forward.1} parent=39 // pred_region
        %s2007 = smul.u32 16, %s16
      $region44: #{net_forward.1} parent=39 // pred_fallthru
        _
    $region40: #{net_forward.1} parent=5 // pred_fallthru
      _
    %p2008 = scmp.le.s32.totalorder 2, %s11
    // Predicated region
    $region45: #{net_forward.1} parent=5 // pred_check
      %p2009 = pneg %p2008
    $region46: #{net_forward.1} parent=5 // pred_check_branch
      %2011 = sbr.rel (%p2009) target = $region48
    $region47: #{net_forward.1} parent=5 // pred_region
      %s2012 = ssub.s32 %s11, 2
      // Predicated region
      $region49: #{net_forward.1} parent=47 // pred_check
        %p2013 = pneg %p150
      $region50: #{net_forward.1} parent=47 // pred_check_branch
        %2015 = sbr.rel (%p2013) target = $region52
      $region51: #{net_forward.1} parent=47 // pred_region
        %s2016 = smul.u32 16, %s17
        %p2017 = scmp.lt.s32.totalorder %s2016, 31
        %s2018 = scalar_select %p2017, %s2016, 31
        %s2019 = smul.addr %s2018, 8
        %s2020 = scalar_lea.vmem %s5, %s2019
      $region52: #{net_forward.1} parent=47 // pred_fallthru
        _
    $region48: #{net_forward.1} parent=5 // pred_fallthru
      _
  $region6: #{net_forward.1} parent=0 // loop_footer
    %s15 = sadd.s32 1, %s11
  $region7: #{net_forward.1} parent=0 // loop_footer_branch
    %10 = sbr.rel target = $region3
  $region8: #{net_forward.1} parent=0 // loop_exit
    _

</llo_original>
